<compile_context>
chip_gen: v6e
topology: v6e:2x2x1
jax: 0.10.0
libtpu: 0.0.40
codegen_flags: <defaults>
</compile_context>

<pallas_src>
import math
from functools import partial

import jax
import jax.numpy as jnp
from jax.experimental import pallas as pl
from jax.experimental.pallas import tpu as pltpu

# ---- small hyper-parameters consistent with the module (orig values in comments) ----
EMB = 32            # emb_size     (orig 256)
N_FFT = 16          # n_fft        (orig 200)
HOP = 8             # hop_length   (orig 100)
N_CHANNELS = 4      # n_channels   (orig 16)
N_FREQ = N_FFT // 2 + 1
LANE = 128          # TPU lane-tile width

TASK_CLASSES = {'chb-mit': 1, 'iiic-seizure': 6, 'tuab': 1, 'tuev': 6}


# --------------------------------------------------------------------------- helpers
def _positional_encoding(n_pos, d_model):
    position = jnp.arange(n_pos, dtype=jnp.float32)[:, None]
    div_term = jnp.exp(jnp.arange(0, d_model, 2, dtype=jnp.float32)
                       * (-math.log(10000.0) / d_model))
    pe = jnp.zeros((n_pos, d_model), jnp.float32)
    pe = pe.at[:, 0::2].set(jnp.sin(position * div_term))
    pe = pe.at[:, 1::2].set(jnp.cos(position * div_term))
    return pe


def _banded_dft_matrix(T, F):
    """Block-banded real-DFT matrix folding STFT framing into one matmul.

    Shape (T, sin_off + F*N_FREQ):
      col  f*N_FREQ + k            ->  cos(2*pi*k*(t - f*HOP)/N_FFT)  when 0 <= t-f*HOP < N_FFT
      col  sin_off + f*N_FREQ + k  -> -sin(2*pi*k*(t - f*HOP)/N_FFT)  (else 0)
    sin_off is F*N_FREQ rounded up to a 128-lane multiple so the im slice is tile-aligned.
    """
    fnf = F * N_FREQ
    sin_off = ((fnf + LANE - 1) // LANE) * LANE
    t = jnp.arange(T, dtype=jnp.float32)[:, None, None]
    f = jnp.arange(F, dtype=jnp.float32)[None, :, None]
    k = jnp.arange(N_FREQ, dtype=jnp.float32)[None, None, :]
    n = t - f * HOP
    valid = (n >= 0) & (n < N_FFT)
    ang = 2.0 * math.pi * n * k / N_FFT
    cos_b = jnp.where(valid, jnp.cos(ang), 0.0).reshape(T, fnf)
    sin_b = jnp.where(valid, -jnp.sin(ang), 0.0).reshape(T, fnf)
    pad = jnp.zeros((T, sin_off - fnf), jnp.float32)
    return jnp.concatenate([cos_b, pad, sin_b], axis=1), sin_off


def _dft_matrix():
    """Plain [cos | -sin] DFT matrix (N_FFT, 2*N_FREQ) -- used by the pure-JAX reference."""
    n = jnp.arange(N_FFT, dtype=jnp.float32)[:, None]
    k = jnp.arange(N_FREQ, dtype=jnp.float32)[None, :]
    ang = 2.0 * math.pi * n * k / N_FFT
    return jnp.concatenate([jnp.cos(ang), -jnp.sin(ang)], axis=1)


def make_params(key):
    ks = jax.random.split(key, 3 + 2 * len(TASK_CLASSES))
    params = {
        'proj_w': 0.1 * jax.random.normal(ks[0], (N_FREQ, EMB), jnp.float32),
        'proj_b': 0.1 * jax.random.normal(ks[1], (EMB,), jnp.float32),
        'channel_tokens': 0.1 * jax.random.normal(ks[2], (N_CHANNELS, EMB),
                                                  jnp.float32),
        'cls': {},
    }
    for i, (task, n_cls) in enumerate(TASK_CLASSES.items()):
        params['cls'][task] = (
            0.1 * jax.random.normal(ks[3 + 2 * i], (EMB, n_cls), jnp.float32),
            0.1 * jax.random.normal(ks[4 + 2 * i], (n_cls,), jnp.float32),
        )
    return params


# --------------------------------------------------------------------------- kernel
def _make_fused_kernel(bB, C, T, F, sin_off):
    """Fully fused forward for one batch-block (bB batches) per grid step."""
    fnf = F * N_FREQ

    def kernel(x_ref, dft_ref, wpool_ref, cbias_ref, wc_ref, bc_ref, out_ref):
        # (bB, C, T) -> (bB*C, T): trivial leading-dim merge (lane dim unchanged).
        x2 = x_ref[...].reshape(bB * C, T)

        # STFT framing + combined [cos | -sin] DFT as ONE MXU matmul.
        spec = jnp.dot(x2, dft_ref[...],
                       preferred_element_type=jnp.float32)   # (bB*C, sin_off + fnf)

        # Lane-tile-aligned static slices: cos block at lane 0, -sin block at sin_off.
        re = spec[:, :fnf]
        im = spec[:, sin_off:sin_off + fnf]
        mag = jnp.sqrt(re * re + im * im)                     # (bB*C, F*N_FREQ)

        # TODO(synk): xLSTMBlockStack (mlstm/slstm) and LinearAttentionTransformer
        # come from external libraries with no in-script definition; identity here.
        # The pool-through-projection fold below is exact ONLY under that identity.

        # Per-batch channel sum; the frame sum, the 1/(C*F) mean scale and
        # Linear(n_freq -> emb) are all folded into wpool (host-tiled proj_w).
        if bB == 1:
            mag_b = jnp.sum(mag, axis=0, keepdims=True)       # (1, F*N_FREQ)
        else:
            mag_b = mag.reshape(bB, C, fnf).sum(axis=1)       # (bB, F*N_FREQ)
        pooled = (jnp.dot(mag_b, wpool_ref[...],
                          preferred_element_type=jnp.float32)
                  + cbias_ref[...])                           # (bB, EMB)

        # ClassificationHead: ELU -> Linear(emb -> n_classes).
        act = jnp.where(pooled > 0, pooled,
                        jnp.exp(jnp.minimum(pooled, 0.0)) - 1.0)
        out = (jnp.dot(act, wc_ref[...], preferred_element_type=jnp.float32)
               + bc_ref[...])                                 # (bB, n_cls)
        out_ref[...] = out[None, :, :]                        # (1, bB, n_cls)

    return kernel


# --------------------------------------------------------------------------- wrapper
@partial(jax.jit, static_argnames=('task', 'num_blocks'))
def supervised_pretrain_forward(x, params, task='chb-mit', num_blocks=None):
    B, C, T = x.shape
    F = (T - N_FFT) // HOP + 1          # torch.stft(center=False) frame count
    fnf = F * N_FREQ
    L = C * F

    # One fat grid step per TensorCore: v7x has 2 TCs (steps marked "parallel");
    # pass num_blocks=1 on single-TC v5e/v6e to collapse to a single step.
    if num_blocks is None:
        num_blocks = min(B, 2)
    bB = -(-B // num_blocks)
    B_pad = bB * num_blocks
    if B_pad != B:
        x = jnp.concatenate([x, jnp.zeros((B_pad - B, C, T), x.dtype)], axis=0)

    # Host-side constants / weight fusions (constant-folded or fused by jit).
    banded_dft, sin_off = _banded_dft_matrix(T, F)            # (T, sin_off + fnf)
    pe = _positional_encoding(F, EMB)                         # (F, EMB)
    w_pool = jnp.tile(params['proj_w'], (F, 1)) / float(L)    # (fnf, EMB)
    c_bias = (params['proj_b'] + params['channel_tokens'].mean(axis=0)
              + pe.mean(axis=0)).reshape(1, EMB)              # (1, EMB)

    w_cls, b_cls = params['cls'][task]
    n_cls = w_cls.shape[1]
    b_cls2 = b_cls.reshape(1, n_cls)

    # Advisory cost hint for the XLA scheduler.
    W_total = banded_dft.shape[1]
    flops = (2 * B_pad * C * T * W_total        # banded DFT matmul
             + 4 * B_pad * C * fnf              # magnitude
             + 2 * B_pad * fnf * EMB            # pooled projection matmul
             + 2 * B_pad * EMB * n_cls)         # classifier
    transcendentals = B_pad * C * fnf + B_pad * EMB   # sqrt + exp
    bytes_accessed = 4 * (B_pad * C * T + T * W_total + fnf * EMB + EMB
                          + EMB * n_cls + n_cls + B_pad * n_cls)

    out3 = pl.pallas_call(
        _make_fused_kernel(bB, C, T, F, sin_off),
        out_shape=jax.ShapeDtypeStruct((num_blocks, bB, n_cls), jnp.float32),
        grid=(num_blocks,),
        in_specs=[
            pl.BlockSpec((bB, C, T), lambda b: (b, 0, 0)),        # x batch block
            pl.BlockSpec((T, W_total), lambda b: (0, 0)),         # banded [cos|-sin]
            pl.BlockSpec((fnf, EMB), lambda b: (0, 0)),           # tiled proj W / L
            pl.BlockSpec((1, EMB), lambda b: (0, 0)),             # fused const bias
            pl.BlockSpec((EMB, n_cls), lambda b: (0, 0)),         # classifier W
            pl.BlockSpec((1, n_cls), lambda b: (0, 0)),           # classifier b
        ],
        out_specs=pl.BlockSpec((1, bB, n_cls), lambda b: (b, 0, 0)),
        compiler_params=pltpu.CompilerParams(
            dimension_semantics=("parallel",)),
        cost_estimate=pl.CostEstimate(flops=flops,
                                      transcendentals=transcendentals,
                                      bytes_accessed=bytes_accessed),
    )(x, banded_dft, w_pool, c_bias, w_cls, b_cls2)

    return out3.reshape(B_pad, n_cls)[:B]


# --------------------------------------------------------------------------- reference
def _reference_forward(x, params, task):
    """Pure-JAX mirror of the PyTorch forward (xLSTM/transformer as identity)."""
    B, C, T = x.shape
    F = (T - N_FFT) // HOP + 1
    dft = _dft_matrix()
    pe = _positional_encoding(F, EMB)
    idx = (jnp.arange(F) * HOP)[:, None] + jnp.arange(N_FFT)[None, :]
    embs = []
    for c in range(C):
        frames = x[:, c, :][:, idx]                              # (B, F, N_FFT)
        spec = frames @ dft                                      # (B, F, 2*N_FREQ)
        mag = jnp.sqrt(spec[..., :N_FREQ] ** 2 + spec[..., N_FREQ:] ** 2)
        proj = mag @ params['proj_w'] + params['proj_b']
        embs.append(proj + params['channel_tokens'][c] + pe[None])
    emb = jnp.concatenate(embs, axis=1)                          # (B, C*F, EMB)
    pooled = emb.mean(axis=1)
    act = jnp.where(pooled > 0, pooled, jnp.exp(jnp.minimum(pooled, 0.0)) - 1.0)
    w, b = params['cls'][task]
    return act @ w + b


# --------------------------------------------------------------------------- main
if __name__ == "__main__":
    jax.config.update('jax_default_matmul_precision', 'highest')

    key = jax.random.PRNGKey(0)
    k_x, k_p = jax.random.split(key)
    B, T = 2, 64
    x = jax.random.normal(k_x, (B, N_CHANNELS, T), jnp.float32)
    params = make_params(k_p)

    out = supervised_pretrain_forward(x, params, task='chb-mit')
    out = jax.block_until_ready(out)
    assert out.shape == (B, 1) and out.dtype == jnp.float32

    ref = jax.block_until_ready(_reference_forward(x, params, 'chb-mit'))
    assert jnp.allclose(out, ref, rtol=5e-3, atol=5e-3), (out, ref)

    print("KERNEL_OK")
</pallas_src>

<mosaic_0001>
module attributes {stable_mosaic.version = 11 : i64} {
  func.func @kernel(%arg0: i32, %arg1: memref<1x4x64xf32, #tpu.memory_space<vmem>>, %arg2: memref<64x191xf32, #tpu.memory_space<vmem>>, %arg3: memref<63x32xf32, #tpu.memory_space<vmem>>, %arg4: memref<1x32xf32, #tpu.memory_space<vmem>>, %arg5: memref<32x1xf32, #tpu.memory_space<vmem>>, %arg6: memref<1x1xf32, #tpu.memory_space<vmem>>, %arg7: memref<1x1x1xf32, #tpu.memory_space<vmem>>) attributes {dimension_semantics = [#tpu.dimension_semantics<parallel>], iteration_bounds = array<i64: 2>, scalar_prefetch = 0 : i64, scratch_operands = 0 : i64, tpu.core_type = #tpu.core_type<tc>, window_params = [{transform_indices = @transform_0, window_bounds = array<i64: 1, 4, 64>}, {pipeline_mode = #tpu.pipeline_mode<synchronous>, transform_indices = @transform_1, window_bounds = array<i64: 64, 191>}, {pipeline_mode = #tpu.pipeline_mode<synchronous>, transform_indices = @transform_2, window_bounds = array<i64: 63, 32>}, {pipeline_mode = #tpu.pipeline_mode<synchronous>, transform_indices = @transform_3, window_bounds = array<i64: 1, 32>}, {pipeline_mode = #tpu.pipeline_mode<synchronous>, transform_indices = @transform_4, window_bounds = array<i64: 32, 1>}, {pipeline_mode = #tpu.pipeline_mode<synchronous>, transform_indices = @transform_5, window_bounds = array<i64: 1, 1>}, {transform_indices = @transform_6, window_bounds = array<i64: 1, 1, 1>}]} {
    %c0 = arith.constant 0 : index
    %c0_0 = arith.constant 0 : index
    %c0_1 = arith.constant 0 : index
    %0 = vector.load %arg1[%c0, %c0_0, %c0_1] : memref<1x4x64xf32, #tpu.memory_space<vmem>>, vector<1x4x64xf32>
    %1 = vector.shape_cast %0 : vector<1x4x64xf32> to vector<4x64xf32>
    %c0_2 = arith.constant 0 : index
    %c0_3 = arith.constant 0 : index
    %2 = vector.load %arg2[%c0_2, %c0_3] : memref<64x191xf32, #tpu.memory_space<vmem>>, vector<64x191xf32>
    %cst = arith.constant dense<0.000000e+00> : vector<4x191xf32>
    %3 = tpu.matmul %1, %2, %cst {dimension_numbers = #tpu.dot_dimension_numbers<[1], [0], [0], [1], [0, 0, 1, 1], [], []>, precision = #tpu.contract_precision<fp32>} : vector<4x64xf32>, vector<64x191xf32>, vector<4x191xf32> -> vector<4x191xf32>
    %4 = vector.extract_strided_slice %3 {offsets = [0, 0], sizes = [4, 63], strides = [1, 1]} : vector<4x191xf32> to vector<4x63xf32>
    %5 = vector.extract_strided_slice %3 {offsets = [0, 128], sizes = [4, 63], strides = [1, 1]} : vector<4x191xf32> to vector<4x63xf32>
    %6 = arith.mulf %4, %4 : vector<4x63xf32>
    %7 = arith.mulf %5, %5 : vector<4x63xf32>
    %8 = arith.addf %6, %7 : vector<4x63xf32>
    %9 = math.sqrt %8 : vector<4x63xf32>
    %cst_4 = arith.constant dense<0.000000e+00> : vector<63xf32>
    %10 = vector.multi_reduction <add>, %9, %cst_4 [0] : vector<4x63xf32> to vector<63xf32>
    %11 = vector.shape_cast %10 : vector<63xf32> to vector<1x63xf32>
    %c0_5 = arith.constant 0 : index
    %c0_6 = arith.constant 0 : index
    %12 = vector.load %arg3[%c0_5, %c0_6] : memref<63x32xf32, #tpu.memory_space<vmem>>, vector<63x32xf32>
    %cst_7 = arith.constant dense<0.000000e+00> : vector<1x32xf32>
    %13 = tpu.matmul %11, %12, %cst_7 {dimension_numbers = #tpu.dot_dimension_numbers<[1], [0], [0], [1], [0, 0, 1, 1], [], []>, precision = #tpu.contract_precision<fp32>} : vector<1x63xf32>, vector<63x32xf32>, vector<1x32xf32> -> vector<1x32xf32>
    %c0_8 = arith.constant 0 : index
    %c0_9 = arith.constant 0 : index
    %14 = vector.load %arg4[%c0_8, %c0_9] : memref<1x32xf32, #tpu.memory_space<vmem>>, vector<1x32xf32>
    %15 = arith.addf %13, %14 : vector<1x32xf32>
    %cst_10 = arith.constant 0.000000e+00 : f32
    %16 = vector.broadcast %cst_10 : f32 to vector<1x32xf32>
    %17 = arith.cmpf ogt, %15, %16 : vector<1x32xf32>
    %cst_11 = arith.constant 0.000000e+00 : f32
    %18 = vector.broadcast %cst_11 : f32 to vector<1x32xf32>
    %19 = arith.minimumf %15, %18 : vector<1x32xf32>
    %20 = math.exp %19 : vector<1x32xf32>
    %cst_12 = arith.constant 1.000000e+00 : f32
    %21 = vector.broadcast %cst_12 : f32 to vector<1x32xf32>
    %22 = arith.subf %20, %21 : vector<1x32xf32>
    %23 = arith.select %17, %15, %22 : vector<1x32xi1>, vector<1x32xf32>
    %c0_13 = arith.constant 0 : index
    %c0_14 = arith.constant 0 : index
    %24 = vector.load %arg5[%c0_13, %c0_14] : memref<32x1xf32, #tpu.memory_space<vmem>>, vector<32x1xf32>
    %cst_15 = arith.constant dense<0.000000e+00> : vector<1x1xf32>
    %25 = tpu.matmul %23, %24, %cst_15 {dimension_numbers = #tpu.dot_dimension_numbers<[1], [0], [0], [1], [0, 0, 1, 1], [], []>, precision = #tpu.contract_precision<fp32>} : vector<1x32xf32>, vector<32x1xf32>, vector<1x1xf32> -> vector<1x1xf32>
    %c0_16 = arith.constant 0 : index
    %c0_17 = arith.constant 0 : index
    %26 = vector.load %arg6[%c0_16, %c0_17] : memref<1x1xf32, #tpu.memory_space<vmem>>, vector<1x1xf32>
    %27 = arith.addf %25, %26 : vector<1x1xf32>
    %28 = vector.shape_cast %27 : vector<1x1xf32> to vector<1x1x1xf32>
    %c0_18 = arith.constant 0 : index
    %c0_19 = arith.constant 0 : index
    %c0_20 = arith.constant 0 : index
    %29 = vector.load %arg7[%c0_18, %c0_19, %c0_20] : memref<1x1x1xf32, #tpu.memory_space<vmem>>, vector<1x1x1xf32>
    tpu.vector_store %arg7[%c0_18, %c0_19, %c0_20], %28 {strides = array<i32>} : memref<1x1x1xf32, #tpu.memory_space<vmem>>, vector<1x1x1xf32>,
    return
  }
  func.func @transform_0(%arg0: i32) -> (i32, i32, i32) {
    %c0_i32 = arith.constant 0 : i32
    %c0_i32_0 = arith.constant 0 : i32
    %c0_i32_1 = arith.constant 0 : i32
    return %arg0, %c0_i32, %c0_i32_0 : i32, i32, i32
  }
  func.func @transform_1(%arg0: i32) -> (i32, i32) {
    %c0_i32 = arith.constant 0 : i32
    %c0_i32_0 = arith.constant 0 : i32
    %c0_i32_1 = arith.constant 0 : i32
    return %c0_i32, %c0_i32_0 : i32, i32
  }
  func.func @transform_2(%arg0: i32) -> (i32, i32) {
    %c0_i32 = arith.constant 0 : i32
    %c0_i32_0 = arith.constant 0 : i32
    %c0_i32_1 = arith.constant 0 : i32
    return %c0_i32, %c0_i32_0 : i32, i32
  }
  func.func @transform_3(%arg0: i32) -> (i32, i32) {
    %c0_i32 = arith.constant 0 : i32
    %c0_i32_0 = arith.constant 0 : i32
    %c0_i32_1 = arith.constant 0 : i32
    return %c0_i32, %c0_i32_0 : i32, i32
  }
  func.func @transform_4(%arg0: i32) -> (i32, i32) {
    %c0_i32 = arith.constant 0 : i32
    %c0_i32_0 = arith.constant 0 : i32
    %c0_i32_1 = arith.constant 0 : i32
    return %c0_i32, %c0_i32_0 : i32, i32
  }
  func.func @transform_5(%arg0: i32) -> (i32, i32) {
    %c0_i32 = arith.constant 0 : i32
    %c0_i32_0 = arith.constant 0 : i32
    %c0_i32_1 = arith.constant 0 : i32
    return %c0_i32, %c0_i32_0 : i32, i32
  }
  func.func @transform_6(%arg0: i32) -> (i32, i32, i32) {
    %c0_i32 = arith.constant 0 : i32
    %c0_i32_0 = arith.constant 0 : i32
    %c0_i32_1 = arith.constant 0 : i32
    return %arg0, %c0_i32, %c0_i32_0 : i32, i32, i32
  }
}

</mosaic_0001>

<llo_original>
// kernel: supervised_pretrain_forward.1
$region0: #{supervised_pretrain_forward.1}
  #allocation0 [shape = 'u32[]', space=smem, size = 0x4, offset = 0x4, fixed_abs, tag = 'smem constant byte address 0x4 - core index']
  #allocation1 [shape = 'u32[144,128]{1,0:T(1,128)}', space=vmem, size = 0x12000, scoped, tag = 'internal scratch']
  #allocation2 [shape = 'f32[1,1]{1,0:T(1,128)S(1)}', space=vmem, size = 0x200, scoped, tag = 'scoped memory for supervised_pretrain_forward.1']
  %s0 = inlined_call_operand.vmem [shape: f32[2,4,64], index: 0, kind: input, shape index: {}]
  %s1 = inlined_call_operand.vmem [shape: f32[64,191], index: 1, kind: input, shape index: {}]
  %s2 = inlined_call_operand.vmem [shape: f32[63,32], index: 2, kind: input, shape index: {}]
  %s3 = inlined_call_operand.vmem [shape: f32[1,32], index: 3, kind: input, shape index: {}]
  %s4 = inlined_call_operand.vmem [shape: f32[32,1], index: 4, kind: input, shape index: {}]
  %s5 = inlined_call_operand.<no memory space> [shape: f32[1,1], index: 5, kind: input, shape index: {}]
  %s6 = inlined_call_operand.vmem [shape: f32[2,1,1], index: 6, kind: output, shape index: {}]
  %s7 = sld [smem:[#allocation0]]
  $region57: #{supervised_pretrain_forward.1} parent=0
    _
  %s9 = ssub.s32 1, %s7
  %s10 = scalar_select 0, %s9, %s7
  %v11 = vstv %s5
  %12 = vst [vmem:[#allocation2] sm:$0x1] %v11
  loop: start=0, step=1, limit=4
  $region2: #{supervised_pretrain_forward.1} parent=0 // loop_pre_header
    _
  $region3: #{supervised_pretrain_forward.1} parent=0 // loop_header
    %s14 = sphi 0, %s18
    %p15 = scmp.ge.s32.totalorder %s14, 4
    %s24 = sphi 0, %s26
    %s27 = sphi 0, %s24
    %s28 = sphi 0, %s27
    %s44 = sphi 0, %s28
    %s48 = sphi 0, %s48
    %s50 = sphi 0, %s48
    %s51 = sphi 0, %s50
    %s65 = sphi 0, %s51
    %s69 = sphi 0, %s69
    %s71 = sphi 0, %s69
    %s72 = sphi 0, %s71
    %s86 = sphi 0, %s72
    %s90 = sphi 0, %s90
    %s92 = sphi 0, %s90
    %s93 = sphi 0, %s92
    %s107 = sphi 0, %s93
    %s111 = sphi 0, %s111
    %s113 = sphi 0, %s111
    %s114 = sphi 0, %s113
    %s128 = sphi 0, %s114
    %s132 = sphi 0, %s132
    %s134 = sphi 0, %s132
    %s135 = sphi 0, %s134
    %s149 = sphi 0, %s135
    %s155 = sphi 0, %s157
    %s158 = sphi 0, %s155
    %s159 = sphi 0, %s158
    %s175 = sphi 0, %s159
  $region4: #{supervised_pretrain_forward.1} parent=0 // loop_header_branch
    %17 = sbr.rel (%p15) target = $region8
  $region5: #{supervised_pretrain_forward.1} parent=0 // loop_body
    %s19 = ssub.s32 %s14, 1
    %s20 = ssub.s32 %s14, 2
    %s21 = sadd.s32 %s14, 1
    %s22 = ssub.s32 %s14, %s21
    %p23 = scmp.eq.s32.totalorder %s22, 0
    %s25 = sadd.s32 %s24, 1
    %s26 = scalar_select %p23, %s24, %s25
    %p29 = pneg %p23
    %p30 = scmp.eq.s32.totalorder %s14, 1
    %p31 = por %p29, %p30
    %p32 = scmp.ne.s32.totalorder %s24, %s27
    %p33 = scmp.eq.s32.totalorder %s14, 0
    %p34 = por %p32, %p33
    %p35 = scmp.ne.s32.totalorder %s24, %s27
    %p36 = scmp.eq.s32.totalorder %s19, 1
    %p37 = por %p35, %p36
    %p38 = scmp.ne.s32.totalorder %s27, %s28
    %p39 = scmp.eq.s32.totalorder %s19, 0
    %p40 = por %p38, %p39
    %p41 = scmp.ne.s32.totalorder %s27, %s28
    %p42 = scmp.eq.s32.totalorder %s20, 1
    %p43 = por %p41, %p42
    %p45 = scmp.ne.s32.totalorder %s28, %s44
    %p46 = scmp.eq.s32.totalorder %s20, 0
    %p47 = por %p45, %p46
    %s49 = sadd.s32 %s48, 1
    %p52 = scmp.eq.s32.totalorder %s14, 1
    %p53 = scmp.ne.s32.totalorder %s48, %s50
    %p54 = scmp.eq.s32.totalorder %s14, 0
    %p55 = por %p53, %p54
    %p56 = scmp.ne.s32.totalorder %s48, %s50
    %p57 = scmp.eq.s32.totalorder %s19, 1
    %p58 = por %p56, %p57
    %p59 = scmp.ne.s32.totalorder %s50, %s51
    %p60 = scmp.eq.s32.totalorder %s19, 0
    %p61 = por %p59, %p60
    %p62 = scmp.ne.s32.totalorder %s50, %s51
    %p63 = scmp.eq.s32.totalorder %s20, 1
    %p64 = por %p62, %p63
    %p66 = scmp.ne.s32.totalorder %s51, %s65
    %p67 = scmp.eq.s32.totalorder %s20, 0
    %p68 = por %p66, %p67
    %s70 = sadd.s32 %s69, 1
    %p73 = scmp.eq.s32.totalorder %s14, 1
    %p74 = scmp.ne.s32.totalorder %s69, %s71
    %p75 = scmp.eq.s32.totalorder %s14, 0
    %p76 = por %p74, %p75
    %p77 = scmp.ne.s32.totalorder %s69, %s71
    %p78 = scmp.eq.s32.totalorder %s19, 1
    %p79 = por %p77, %p78
    %p80 = scmp.ne.s32.totalorder %s71, %s72
    %p81 = scmp.eq.s32.totalorder %s19, 0
    %p82 = por %p80, %p81
    %p83 = scmp.ne.s32.totalorder %s71, %s72
    %p84 = scmp.eq.s32.totalorder %s20, 1
    %p85 = por %p83, %p84
    %p87 = scmp.ne.s32.totalorder %s72, %s86
    %p88 = scmp.eq.s32.totalorder %s20, 0
    %p89 = por %p87, %p88
    %s91 = sadd.s32 %s90, 1
    %p94 = scmp.eq.s32.totalorder %s14, 1
    %p95 = scmp.ne.s32.totalorder %s90, %s92
    %p96 = scmp.eq.s32.totalorder %s14, 0
    %p97 = por %p95, %p96
    %p98 = scmp.ne.s32.totalorder %s90, %s92
    %p99 = scmp.eq.s32.totalorder %s19, 1
    %p100 = por %p98, %p99
    %p101 = scmp.ne.s32.totalorder %s92, %s93
    %p102 = scmp.eq.s32.totalorder %s19, 0
    %p103 = por %p101, %p102
    %p104 = scmp.ne.s32.totalorder %s92, %s93
    %p105 = scmp.eq.s32.totalorder %s20, 1
    %p106 = por %p104, %p105
    %p108 = scmp.ne.s32.totalorder %s93, %s107
    %p109 = scmp.eq.s32.totalorder %s20, 0
    %p110 = por %p108, %p109
    %s112 = sadd.s32 %s111, 1
    %p115 = scmp.eq.s32.totalorder %s14, 1
    %p116 = scmp.ne.s32.totalorder %s111, %s113
    %p117 = scmp.eq.s32.totalorder %s14, 0
    %p118 = por %p116, %p117
    %p119 = scmp.ne.s32.totalorder %s111, %s113
    %p120 = scmp.eq.s32.totalorder %s19, 1
    %p121 = por %p119, %p120
    %p122 = scmp.ne.s32.totalorder %s113, %s114
    %p123 = scmp.eq.s32.totalorder %s19, 0
    %p124 = por %p122, %p123
    %p125 = scmp.ne.s32.totalorder %s113, %s114
    %p126 = scmp.eq.s32.totalorder %s20, 1
    %p127 = por %p125, %p126
    %p129 = scmp.ne.s32.totalorder %s114, %s128
    %p130 = scmp.eq.s32.totalorder %s20, 0
    %p131 = por %p129, %p130
    %s133 = sadd.s32 %s132, 1
    %p136 = scmp.eq.s32.totalorder %s14, 1
    %p137 = scmp.ne.s32.totalorder %s132, %s134
    %p138 = scmp.eq.s32.totalorder %s14, 0
    %p139 = por %p137, %p138
    %p140 = scmp.ne.s32.totalorder %s132, %s134
    %p141 = scmp.eq.s32.totalorder %s19, 1
    %p142 = por %p140, %p141
    %p143 = scmp.ne.s32.totalorder %s134, %s135
    %p144 = scmp.eq.s32.totalorder %s19, 0
    %p145 = por %p143, %p144
    %p146 = scmp.ne.s32.totalorder %s134, %s135
    %p147 = scmp.eq.s32.totalorder %s20, 1
    %p148 = por %p146, %p147
    %p150 = scmp.ne.s32.totalorder %s135, %s149
    %p151 = scmp.eq.s32.totalorder %s20, 0
    %p152 = por %p150, %p151
    %s153 = ssub.s32 %s14, %s21
    %p154 = scmp.eq.s32.totalorder %s153, 0
    %s156 = sadd.s32 %s155, 1
    %s157 = scalar_select %p154, %s155, %s156
    %p160 = pneg %p154
    %p161 = scmp.eq.s32.totalorder %s14, 1
    %p162 = por %p160, %p161
    %p163 = scmp.ne.s32.totalorder %s155, %s158
    %p164 = scmp.eq.s32.totalorder %s14, 0
    %p165 = por %p163, %p164
    %p166 = scmp.ne.s32.totalorder %s155, %s158
    %p167 = scmp.eq.s32.totalorder %s19, 1
    %p168 = por %p166, %p167
    %p169 = scmp.ne.s32.totalorder %s158, %s159
    %p170 = scmp.eq.s32.totalorder %s19, 0
    %p171 = por %p169, %p170
    %p172 = scmp.ne.s32.totalorder %s158, %s159
    %p173 = scmp.eq.s32.totalorder %s20, 1
    %p174 = por %p172, %p173
    %p176 = scmp.ne.s32.totalorder %s159, %s175
    %p177 = scmp.eq.s32.totalorder %s20, 0
    %p178 = por %p176, %p177
    %p179 = scmp.le.s32.totalorder 1, %s14
    %p180 = scmp.lt.s32.totalorder %s14, 3
    %p181 = pnand %p179, %p180
    %p182 = pneg %p181
    // Predicated region
    $region9: #{supervised_pretrain_forward.1} parent=5 // pred_check
      _
    $region10: #{supervised_pretrain_forward.1} parent=5 // pred_check_branch
      %184 = sbr.rel (%p181) target = $region12
    $region11: #{supervised_pretrain_forward.1} parent=5 // pred_region
      %s185 = ssub.s32 %s14, 1
      // Predicated region
      $region13: #{supervised_pretrain_forward.1} parent=11 // pred_check
        %p186 = pneg %p61
      $region14: #{supervised_pretrain_forward.1} parent=11 // pred_check_branch
        %188 = sbr.rel (%p186) target = $region16
      $region15: #{supervised_pretrain_forward.1} parent=11 // pred_region
        _
      $region16: #{supervised_pretrain_forward.1} parent=11 // pred_fallthru
        _
      // Predicated region
      $region17: #{supervised_pretrain_forward.1} parent=11 // pred_check
        %p189 = pneg %p82
      $region18: #{supervised_pretrain_forward.1} parent=11 // pred_check_branch
        %191 = sbr.rel (%p189) target = $region20
      $region19: #{supervised_pretrain_forward.1} parent=11 // pred_region
        _
      $region20: #{supervised_pretrain_forward.1} parent=11 // pred_fallthru
        _
      // Predicated region
      $region21: #{supervised_pretrain_forward.1} parent=11 // pred_check
        %p192 = pneg %p103
      $region22: #{supervised_pretrain_forward.1} parent=11 // pred_check_branch
        %194 = sbr.rel (%p192) target = $region24
      $region23: #{supervised_pretrain_forward.1} parent=11 // pred_region
        _
      $region24: #{supervised_pretrain_forward.1} parent=11 // pred_fallthru
        _
      // Predicated region
      $region25: #{supervised_pretrain_forward.1} parent=11 // pred_check
        %p195 = pneg %p124
      $region26: #{supervised_pretrain_forward.1} parent=11 // pred_check_branch
        %197 = sbr.rel (%p195) target = $region28
      $region27: #{supervised_pretrain_forward.1} parent=11 // pred_region
        _
      $region28: #{supervised_pretrain_forward.1} parent=11 // pred_fallthru
        _
      // Predicated region
      $region29: #{supervised_pretrain_forward.1} parent=11 // pred_check
        %p198 = pneg %p145
      $region30: #{supervised_pretrain_forward.1} parent=11 // pred_check_branch
        %200 = sbr.rel (%p198) target = $region32
      $region31: #{supervised_pretrain_forward.1} parent=11 // pred_region
        _
      $region32: #{supervised_pretrain_forward.1} parent=11 // pred_fallthru
        _
    $region12: #{supervised_pretrain_forward.1} parent=5 // pred_fallthru
      _
    %p201 = scmp.lt.s32.totalorder %s14, 2
    // Predicated region
    $region33: #{supervised_pretrain_forward.1} parent=5 // pred_check
      %p202 = pneg %p201
    $region34: #{supervised_pretrain_forward.1} parent=5 // pred_check_branch
      %204 = sbr.rel (%p202) target = $region36
    $region35: #{supervised_pretrain_forward.1} parent=5 // pred_region
      // Predicated region
      $region37: #{supervised_pretrain_forward.1} parent=35 // pred_check
        %p205 = pneg %p34
      $region38: #{supervised_pretrain_forward.1} parent=35 // pred_check_branch
        %207 = sbr.rel (%p205) target = $region40
      $region39: #{supervised_pretrain_forward.1} parent=35 // pred_region
        %p208 = scmp.lt.s32.totalorder %s14, 1
        %s209 = scalar_select %p208, %s14, 1
        %s210 = smul.addr %s209, 4
        %s211 = scalar_lea.vmem %s0, %s210
      $region40: #{supervised_pretrain_forward.1} parent=35 // pred_fallthru
        _
    $region36: #{supervised_pretrain_forward.1} parent=5 // pred_fallthru
      _
    %p212 = scmp.le.s32.totalorder 1, %s14
    %p213 = scmp.lt.s32.totalorder %s14, 3
    %p214 = pnand %p212, %p213
    %p215 = pneg %p214
    // Predicated region
    $region41: #{supervised_pretrain_forward.1} parent=5 // pred_check
      _
    $region42: #{supervised_pretrain_forward.1} parent=5 // pred_check_branch
      %217 = sbr.rel (%p214) target = $region44
    $region43: #{supervised_pretrain_forward.1} parent=5 // pred_region
      %s218 = ssub.s32 %s14, 1
      %p219 = scmp.lt.s32.totalorder %s19, 1
      %s220 = scalar_select %p219, %s19, 1
      %s221 = smul.addr %s220, 4
      %s222 = scalar_lea.vmem %s0, %s221
      %p223 = pneg %p40
      %p224 = pneg %p37
      %p225 = pneg %p61
      %p226 = pneg %p58
      %p227 = pneg %p82
      %p228 = pneg %p79
      %p229 = pneg %p103
      %p230 = pneg %p100
      %p231 = pneg %p124
      %p232 = pneg %p121
      %p233 = pneg %p145
      %p234 = pneg %p142
      %p235 = pneg %p171
      %p236 = pneg %p168
      %p237 = scmp.lt.s32.totalorder %s19, 1
      %s238 = scalar_select %p237, %s19, 1
      %s239 = scalar_lea.vmem %s6, %s238
      %p240 = scmp.lt.s32.totalorder %s19, 1
      %s241 = scalar_select %p240, %s19, 1
      %s242 = smul.addr %s241, 4
      %s243 = scalar_lea.vmem %s0, %s242
      %p244 = scmp.lt.s32.totalorder %s19, 1
      %s245 = scalar_select %p244, %s19, 1
      %s246 = scalar_lea.vmem %s6, %s245
      %v247 = vld [vmem:[%s243] sm:$0xf]
      %v248 = vld [vmem:[%s1] sm:$0xff]
      %v249 = vld [vmem:[%s1 + $0x8] sm:$0xff]
      %v250 = vld [vmem:[%s1 + $0x10] sm:$0xff]
      %v251 = vld [vmem:[%s1 + $0x18] sm:$0xff]
      %v252 = vld [vmem:[%s1 + $0x20] sm:$0xff]
      %v253 = vld [vmem:[%s1 + $0x28] sm:$0xff]
      %v254 = vld [vmem:[%s1 + $0x30] sm:$0xff]
      %v255 = vld [vmem:[%s1 + $0x38] sm:$0xff]
      %v256 = vld [vmem:[%s1 + $0x40] sm:$0xff]
      %v257 = vld [vmem:[%s1 + $0x48] sm:$0xff]
      %v258 = vld [vmem:[%s1 + $0x50] sm:$0xff]
      %v259 = vld [vmem:[%s1 + $0x58] sm:$0xff]
      %v260 = vld [vmem:[%s1 + $0x60] sm:$0xff]
      %v261 = vld [vmem:[%s1 + $0x68] sm:$0xff]
      %v262 = vld [vmem:[%s1 + $0x70] sm:$0xff]
      %v263 = vld [vmem:[%s1 + $0x78] sm:$0xff]
      %vm264 = vcmask 523264
      %v266 = vsel %vm264, %v247, 0
      %268 = vmatprep.subr.mxu0 0.0
      %269 = vmatpush1.msra.mxu0 0.0
      %270 = vmatprep.subr.mxu0 0.0
      %271 = vmatpush1.msra.mxu0 0.0
      %272 = vmatprep.subr.mxu0 0.0
      %273 = vmatpush1.msra.mxu0 0.0
      %274 = vmatprep.subr.mxu0 0.0
      %275 = vmatpush1.msra.mxu0 0.0
      %276 = vmatprep.subr.mxu0 0.0
      %277 = vmatpush1.msra.mxu0 0.0
      %278 = vmatprep.subr.mxu0 0.0
      %279 = vmatpush1.msra.mxu0 0.0
      %280 = vmatprep.subr.mxu0 0.0
      %281 = vmatpush1.msra.mxu0 0.0
      %282 = vmatprep.subr.mxu0 0.0
      %283 = vmatpush1.msra.mxu0 0.0
      %v284 = vand.u32 %v263, 4294901760
      %285 = vmatprep.subr.mxu0 %v284
      %v286 = vand.u32 %v262, 4294901760
      %287 = vmatpush1.msra.mxu0 %v286
      %v288 = vand.u32 %v261, 4294901760
      %289 = vmatprep.subr.mxu0 %v288
      %v290 = vand.u32 %v260, 4294901760
      %291 = vmatpush1.msra.mxu0 %v290
      %v292 = vand.u32 %v259, 4294901760
      %293 = vmatprep.subr.mxu0 %v292
      %v294 = vand.u32 %v258, 4294901760
      %295 = vmatpush1.msra.mxu0 %v294
      %v296 = vand.u32 %v257, 4294901760
      %297 = vmatprep.subr.mxu0 %v296
      %v298 = vand.u32 %v256, 4294901760
      %299 = vmatpush1.msra.mxu0 %v298
      %v300 = vand.u32 %v255, 4294901760
      %301 = vmatprep.subr.mxu0 %v300
      %v302 = vand.u32 %v254, 4294901760
      %303 = vmatpush1.msra.mxu0 %v302
      %v304 = vand.u32 %v253, 4294901760
      %305 = vmatprep.subr.mxu0 %v304
      %v306 = vand.u32 %v252, 4294901760
      %307 = vmatpush1.msra.mxu0 %v306
      %v308 = vand.u32 %v251, 4294901760
      %309 = vmatprep.subr.mxu0 %v308
      %v310 = vand.u32 %v250, 4294901760
      %311 = vmatpush1.msra.mxu0 %v310
      %v312 = vand.u32 %v249, 4294901760
      %313 = vmatprep.subr.mxu0 %v312
      %v314 = vand.u32 %v248, 4294901760
      %315 = vmatpush1.msra.mxu0 %v314
      %316 = vmatprep.subr.mxu0 0.0
      %317 = vmatpush2.msra.mxu0 0.0
      %318 = vmatprep.subr.mxu0 0.0
      %319 = vmatpush2.msra.mxu0 0.0
      %320 = vmatprep.subr.mxu0 0.0
      %321 = vmatpush2.msra.mxu0 0.0
      %322 = vmatprep.subr.mxu0 0.0
      %323 = vmatpush2.msra.mxu0 0.0
      %324 = vmatprep.subr.mxu0 0.0
      %325 = vmatpush2.msra.mxu0 0.0
      %326 = vmatprep.subr.mxu0 0.0
      %327 = vmatpush2.msra.mxu0 0.0
      %328 = vmatprep.subr.mxu0 0.0
      %329 = vmatpush2.msra.mxu0 0.0
      %330 = vmatprep.subr.mxu0 0.0
      %331 = vmatpush2.msra.mxu0 0.0
      %332 = vmatprep.subr.mxu0 0.0
      %333 = vmatpush2.msra.mxu0 0.0
      %334 = vmatprep.subr.mxu0 0.0
      %335 = vmatpush2.msra.mxu0 0.0
      %336 = vmatprep.subr.mxu0 0.0
      %337 = vmatpush2.msra.mxu0 0.0
      %338 = vmatprep.subr.mxu0 0.0
      %339 = vmatpush2.msra.mxu0 0.0
      %340 = vmatprep.subr.mxu0 0.0
      %341 = vmatpush2.msra.mxu0 0.0
      %342 = vmatprep.subr.mxu0 0.0
      %343 = vmatpush2.msra.mxu0 0.0
      %344 = vmatprep.subr.mxu0 0.0
      %345 = vmatpush2.msra.mxu0 0.0
      %346 = vmatprep.subr.mxu0 0.0
      %347 = vmatpush2.msra.mxu0 0.0
      %348 = vmatprep.mubr.f32.mxu0 0.0
      %v349 = vand.u32 %v266, 4294901760
      %v350 = vsub.f32 %v266, %v349
      %v351 = vand.u32 %v350, 4294901760
      %v352 = vsub.f32 %v350, %v351
      %v353 = vand.u32 %v352, 4294901760
      %354 = vmatmul.mubr.f32.gmra.mxu0 %v353
      %v355 = vpop.f32.mrf.mxu0
      %v356 = vadd.f32 0.0, %v355
      %v357 = vpop.f32.mrf.mxu0
      %v358 = vadd.f32 0.0, %v357
      %359 = vdwg.mxu0
      %360 = vmatprep.subr.mxu0 0.0
      %361 = vmatpush1.msra.mxu0 0.0
      %362 = vmatprep.subr.mxu0 0.0
      %363 = vmatpush1.msra.mxu0 0.0
      %364 = vmatprep.subr.mxu0 0.0
      %365 = vmatpush1.msra.mxu0 0.0
      %366 = vmatprep.subr.mxu0 0.0
      %367 = vmatpush1.msra.mxu0 0.0
      %368 = vmatprep.subr.mxu0 0.0
      %369 = vmatpush1.msra.mxu0 0.0
      %370 = vmatprep.subr.mxu0 0.0
      %371 = vmatpush1.msra.mxu0 0.0
      %372 = vmatprep.subr.mxu0 0.0
      %373 = vmatpush1.msra.mxu0 0.0
      %374 = vmatprep.subr.mxu0 0.0
      %375 = vmatpush1.msra.mxu0 0.0
      %v376 = vand.u32 %v263, 4294901760
      %v377 = vsub.f32 %v263, %v376
      %v378 = vand.u32 %v377, 4294901760
      %v379 = vsub.f32 %v377, %v378
      %v380 = vand.u32 %v379, 4294901760
      %381 = vmatprep.subr.mxu0 %v380
      %v382 = vand.u32 %v262, 4294901760
      %v383 = vsub.f32 %v262, %v382
      %v384 = vand.u32 %v383, 4294901760
      %v385 = vsub.f32 %v383, %v384
      %v386 = vand.u32 %v385, 4294901760
      %387 = vmatpush1.msra.mxu0 %v386
      %v388 = vand.u32 %v261, 4294901760
      %v389 = vsub.f32 %v261, %v388
      %v390 = vand.u32 %v389, 4294901760
      %v391 = vsub.f32 %v389, %v390
      %v392 = vand.u32 %v391, 4294901760
      %393 = vmatprep.subr.mxu0 %v392
      %v394 = vand.u32 %v260, 4294901760
      %v395 = vsub.f32 %v260, %v394
      %v396 = vand.u32 %v395, 4294901760
      %v397 = vsub.f32 %v395, %v396
      %v398 = vand.u32 %v397, 4294901760
      %399 = vmatpush1.msra.mxu0 %v398
      %v400 = vand.u32 %v259, 4294901760
      %v401 = vsub.f32 %v259, %v400
      %v402 = vand.u32 %v401, 4294901760
      %v403 = vsub.f32 %v401, %v402
      %v404 = vand.u32 %v403, 4294901760
      %405 = vmatprep.subr.mxu0 %v404
      %v406 = vand.u32 %v258, 4294901760
      %v407 = vsub.f32 %v258, %v406
      %v408 = vand.u32 %v407, 4294901760
      %v409 = vsub.f32 %v407, %v408
      %v410 = vand.u32 %v409, 4294901760
      %411 = vmatpush1.msra.mxu0 %v410
      %v412 = vand.u32 %v257, 4294901760
      %v413 = vsub.f32 %v257, %v412
      %v414 = vand.u32 %v413, 4294901760
      %v415 = vsub.f32 %v413, %v414
      %v416 = vand.u32 %v415, 4294901760
      %417 = vmatprep.subr.mxu0 %v416
      %v418 = vand.u32 %v256, 4294901760
      %v419 = vsub.f32 %v256, %v418
      %v420 = vand.u32 %v419, 4294901760
      %v421 = vsub.f32 %v419, %v420
      %v422 = vand.u32 %v421, 4294901760
      %423 = vmatpush1.msra.mxu0 %v422
      %v424 = vand.u32 %v255, 4294901760
      %v425 = vsub.f32 %v255, %v424
      %v426 = vand.u32 %v425, 4294901760
      %v427 = vsub.f32 %v425, %v426
      %v428 = vand.u32 %v427, 4294901760
      %429 = vmatprep.subr.mxu0 %v428
      %v430 = vand.u32 %v254, 4294901760
      %v431 = vsub.f32 %v254, %v430
      %v432 = vand.u32 %v431, 4294901760
      %v433 = vsub.f32 %v431, %v432
      %v434 = vand.u32 %v433, 4294901760
      %435 = vmatpush1.msra.mxu0 %v434
      %v436 = vand.u32 %v253, 4294901760
      %v437 = vsub.f32 %v253, %v436
      %v438 = vand.u32 %v437, 4294901760
      %v439 = vsub.f32 %v437, %v438
      %v440 = vand.u32 %v439, 4294901760
      %441 = vmatprep.subr.mxu0 %v440
      %v442 = vand.u32 %v252, 4294901760
      %v443 = vsub.f32 %v252, %v442
      %v444 = vand.u32 %v443, 4294901760
      %v445 = vsub.f32 %v443, %v444
      %v446 = vand.u32 %v445, 4294901760
      %447 = vmatpush1.msra.mxu0 %v446
      %v448 = vand.u32 %v251, 4294901760
      %v449 = vsub.f32 %v251, %v448
      %v450 = vand.u32 %v449, 4294901760
      %v451 = vsub.f32 %v449, %v450
      %v452 = vand.u32 %v451, 4294901760
      %453 = vmatprep.subr.mxu0 %v452
      %v454 = vand.u32 %v250, 4294901760
      %v455 = vsub.f32 %v250, %v454
      %v456 = vand.u32 %v455, 4294901760
      %v457 = vsub.f32 %v455, %v456
      %v458 = vand.u32 %v457, 4294901760
      %459 = vmatpush1.msra.mxu0 %v458
      %v460 = vand.u32 %v249, 4294901760
      %v461 = vsub.f32 %v249, %v460
      %v462 = vand.u32 %v461, 4294901760
      %v463 = vsub.f32 %v461, %v462
      %v464 = vand.u32 %v463, 4294901760
      %465 = vmatprep.subr.mxu0 %v464
      %v466 = vand.u32 %v248, 4294901760
      %v467 = vsub.f32 %v248, %v466
      %v468 = vand.u32 %v467, 4294901760
      %v469 = vsub.f32 %v467, %v468
      %v470 = vand.u32 %v469, 4294901760
      %471 = vmatpush1.msra.mxu0 %v470
      %472 = vmatprep.subr.mxu0 0.0
      %473 = vmatpush2.msra.mxu0 0.0
      %474 = vmatprep.subr.mxu0 0.0
      %475 = vmatpush2.msra.mxu0 0.0
      %476 = vmatprep.subr.mxu0 0.0
      %477 = vmatpush2.msra.mxu0 0.0
      %478 = vmatprep.subr.mxu0 0.0
      %479 = vmatpush2.msra.mxu0 0.0
      %480 = vmatprep.subr.mxu0 0.0
      %481 = vmatpush2.msra.mxu0 0.0
      %482 = vmatprep.subr.mxu0 0.0
      %483 = vmatpush2.msra.mxu0 0.0
      %484 = vmatprep.subr.mxu0 0.0
      %485 = vmatpush2.msra.mxu0 0.0
      %486 = vmatprep.subr.mxu0 0.0
      %487 = vmatpush2.msra.mxu0 0.0
      %488 = vmatprep.subr.mxu0 0.0
      %489 = vmatpush2.msra.mxu0 0.0
      %490 = vmatprep.subr.mxu0 0.0
      %491 = vmatpush2.msra.mxu0 0.0
      %492 = vmatprep.subr.mxu0 0.0
      %493 = vmatpush2.msra.mxu0 0.0
      %494 = vmatprep.subr.mxu0 0.0
      %495 = vmatpush2.msra.mxu0 0.0
      %496 = vmatprep.subr.mxu0 0.0
      %497 = vmatpush2.msra.mxu0 0.0
      %498 = vmatprep.subr.mxu0 0.0
      %499 = vmatpush2.msra.mxu0 0.0
      %500 = vmatprep.subr.mxu0 0.0
      %501 = vmatpush2.msra.mxu0 0.0
      %502 = vmatprep.subr.mxu0 0.0
      %503 = vmatpush2.msra.mxu0 0.0
      %504 = vmatprep.mubr.f32.mxu0 0.0
      %v505 = vand.u32 %v266, 4294901760
      %506 = vmatmul.mubr.f32.gmra.mxu0 %v505
      %v507 = vpop.f32.mrf.mxu0
      %v508 = vadd.f32 %v356, %v507
      %v509 = vpop.f32.mrf.mxu0
      %v510 = vadd.f32 %v358, %v509
      %511 = vdwg.mxu0
      %512 = vmatprep.subr.mxu0 0.0
      %513 = vmatpush1.msra.mxu0 0.0
      %514 = vmatprep.subr.mxu0 0.0
      %515 = vmatpush1.msra.mxu0 0.0
      %516 = vmatprep.subr.mxu0 0.0
      %517 = vmatpush1.msra.mxu0 0.0
      %518 = vmatprep.subr.mxu0 0.0
      %519 = vmatpush1.msra.mxu0 0.0
      %520 = vmatprep.subr.mxu0 0.0
      %521 = vmatpush1.msra.mxu0 0.0
      %522 = vmatprep.subr.mxu0 0.0
      %523 = vmatpush1.msra.mxu0 0.0
      %524 = vmatprep.subr.mxu0 0.0
      %525 = vmatpush1.msra.mxu0 0.0
      %526 = vmatprep.subr.mxu0 0.0
      %527 = vmatpush1.msra.mxu0 0.0
      %v528 = vand.u32 %v263, 4294901760
      %v529 = vsub.f32 %v263, %v528
      %530 = vmatprep.subr.mxu0 %v529
      %v531 = vand.u32 %v262, 4294901760
      %v532 = vsub.f32 %v262, %v531
      %533 = vmatpush1.msra.mxu0 %v532
      %v534 = vand.u32 %v261, 4294901760
      %v535 = vsub.f32 %v261, %v534
      %536 = vmatprep.subr.mxu0 %v535
      %v537 = vand.u32 %v260, 4294901760
      %v538 = vsub.f32 %v260, %v537
      %539 = vmatpush1.msra.mxu0 %v538
      %v540 = vand.u32 %v259, 4294901760
      %v541 = vsub.f32 %v259, %v540
      %542 = vmatprep.subr.mxu0 %v541
      %v543 = vand.u32 %v258, 4294901760
      %v544 = vsub.f32 %v258, %v543
      %545 = vmatpush1.msra.mxu0 %v544
      %v546 = vand.u32 %v257, 4294901760
      %v547 = vsub.f32 %v257, %v546
      %548 = vmatprep.subr.mxu0 %v547
      %v549 = vand.u32 %v256, 4294901760
      %v550 = vsub.f32 %v256, %v549
      %551 = vmatpush1.msra.mxu0 %v550
      %v552 = vand.u32 %v255, 4294901760
      %v553 = vsub.f32 %v255, %v552
      %554 = vmatprep.subr.mxu0 %v553
      %v555 = vand.u32 %v254, 4294901760
      %v556 = vsub.f32 %v254, %v555
      %557 = vmatpush1.msra.mxu0 %v556
      %v558 = vand.u32 %v253, 4294901760
      %v559 = vsub.f32 %v253, %v558
      %560 = vmatprep.subr.mxu0 %v559
      %v561 = vand.u32 %v252, 4294901760
      %v562 = vsub.f32 %v252, %v561
      %563 = vmatpush1.msra.mxu0 %v562
      %v564 = vand.u32 %v251, 4294901760
      %v565 = vsub.f32 %v251, %v564
      %566 = vmatprep.subr.mxu0 %v565
      %v567 = vand.u32 %v250, 4294901760
      %v568 = vsub.f32 %v250, %v567
      %569 = vmatpush1.msra.mxu0 %v568
      %v570 = vand.u32 %v249, 4294901760
      %v571 = vsub.f32 %v249, %v570
      %572 = vmatprep.subr.mxu0 %v571
      %v573 = vand.u32 %v248, 4294901760
      %v574 = vsub.f32 %v248, %v573
      %575 = vmatpush1.msra.mxu0 %v574
      %576 = vmatprep.subr.mxu0 0.0
      %577 = vmatpush2.msra.mxu0 0.0
      %578 = vmatprep.subr.mxu0 0.0
      %579 = vmatpush2.msra.mxu0 0.0
      %580 = vmatprep.subr.mxu0 0.0
      %581 = vmatpush2.msra.mxu0 0.0
      %582 = vmatprep.subr.mxu0 0.0
      %583 = vmatpush2.msra.mxu0 0.0
      %584 = vmatprep.subr.mxu0 0.0
      %585 = vmatpush2.msra.mxu0 0.0
      %586 = vmatprep.subr.mxu0 0.0
      %587 = vmatpush2.msra.mxu0 0.0
      %588 = vmatprep.subr.mxu0 0.0
      %589 = vmatpush2.msra.mxu0 0.0
      %590 = vmatprep.subr.mxu0 0.0
      %591 = vmatpush2.msra.mxu0 0.0
      %592 = vmatprep.subr.mxu0 0.0
      %593 = vmatpush2.msra.mxu0 0.0
      %594 = vmatprep.subr.mxu0 0.0
      %595 = vmatpush2.msra.mxu0 0.0
      %596 = vmatprep.subr.mxu0 0.0
      %597 = vmatpush2.msra.mxu0 0.0
      %598 = vmatprep.subr.mxu0 0.0
      %599 = vmatpush2.msra.mxu0 0.0
      %600 = vmatprep.subr.mxu0 0.0
      %601 = vmatpush2.msra.mxu0 0.0
      %602 = vmatprep.subr.mxu0 0.0
      %603 = vmatpush2.msra.mxu0 0.0
      %604 = vmatprep.subr.mxu0 0.0
      %605 = vmatpush2.msra.mxu0 0.0
      %606 = vmatprep.subr.mxu0 0.0
      %607 = vmatpush2.msra.mxu0 0.0
      %608 = vmatprep.mubr.f32.mxu0 0.0
      %v609 = vand.u32 %v266, 4294901760
      %v610 = vsub.f32 %v266, %v609
      %611 = vmatmul.mubr.f32.gmra.mxu0 %v610
      %v612 = vpop.f32.mrf.mxu0
      %v613 = vadd.f32 %v508, %v612
      %v614 = vpop.f32.mrf.mxu0
      %v615 = vadd.f32 %v510, %v614
      %616 = vdwg.mxu0
      %617 = vmatprep.subr.mxu0 0.0
      %618 = vmatpush1.msra.mxu0 0.0
      %619 = vmatprep.subr.mxu0 0.0
      %620 = vmatpush1.msra.mxu0 0.0
      %621 = vmatprep.subr.mxu0 0.0
      %622 = vmatpush1.msra.mxu0 0.0
      %623 = vmatprep.subr.mxu0 0.0
      %624 = vmatpush1.msra.mxu0 0.0
      %625 = vmatprep.subr.mxu0 0.0
      %626 = vmatpush1.msra.mxu0 0.0
      %627 = vmatprep.subr.mxu0 0.0
      %628 = vmatpush1.msra.mxu0 0.0
      %629 = vmatprep.subr.mxu0 0.0
      %630 = vmatpush1.msra.mxu0 0.0
      %631 = vmatprep.subr.mxu0 0.0
      %632 = vmatpush1.msra.mxu0 0.0
      %v633 = vand.u32 %v263, 4294901760
      %634 = vmatprep.subr.mxu0 %v633
      %v635 = vand.u32 %v262, 4294901760
      %636 = vmatpush1.msra.mxu0 %v635
      %v637 = vand.u32 %v261, 4294901760
      %638 = vmatprep.subr.mxu0 %v637
      %v639 = vand.u32 %v260, 4294901760
      %640 = vmatpush1.msra.mxu0 %v639
      %v641 = vand.u32 %v259, 4294901760
      %642 = vmatprep.subr.mxu0 %v641
      %v643 = vand.u32 %v258, 4294901760
      %644 = vmatpush1.msra.mxu0 %v643
      %v645 = vand.u32 %v257, 4294901760
      %646 = vmatprep.subr.mxu0 %v645
      %v647 = vand.u32 %v256, 4294901760
      %648 = vmatpush1.msra.mxu0 %v647
      %v649 = vand.u32 %v255, 4294901760
      %650 = vmatprep.subr.mxu0 %v649
      %v651 = vand.u32 %v254, 4294901760
      %652 = vmatpush1.msra.mxu0 %v651
      %v653 = vand.u32 %v253, 4294901760
      %654 = vmatprep.subr.mxu0 %v653
      %v655 = vand.u32 %v252, 4294901760
      %656 = vmatpush1.msra.mxu0 %v655
      %v657 = vand.u32 %v251, 4294901760
      %658 = vmatprep.subr.mxu0 %v657
      %v659 = vand.u32 %v250, 4294901760
      %660 = vmatpush1.msra.mxu0 %v659
      %v661 = vand.u32 %v249, 4294901760
      %662 = vmatprep.subr.mxu0 %v661
      %v663 = vand.u32 %v248, 4294901760
      %664 = vmatpush1.msra.mxu0 %v663
      %665 = vmatprep.subr.mxu0 0.0
      %666 = vmatpush2.msra.mxu0 0.0
      %667 = vmatprep.subr.mxu0 0.0
      %668 = vmatpush2.msra.mxu0 0.0
      %669 = vmatprep.subr.mxu0 0.0
      %670 = vmatpush2.msra.mxu0 0.0
      %671 = vmatprep.subr.mxu0 0.0
      %672 = vmatpush2.msra.mxu0 0.0
      %673 = vmatprep.subr.mxu0 0.0
      %674 = vmatpush2.msra.mxu0 0.0
      %675 = vmatprep.subr.mxu0 0.0
      %676 = vmatpush2.msra.mxu0 0.0
      %677 = vmatprep.subr.mxu0 0.0
      %678 = vmatpush2.msra.mxu0 0.0
      %679 = vmatprep.subr.mxu0 0.0
      %680 = vmatpush2.msra.mxu0 0.0
      %681 = vmatprep.subr.mxu0 0.0
      %682 = vmatpush2.msra.mxu0 0.0
      %683 = vmatprep.subr.mxu0 0.0
      %684 = vmatpush2.msra.mxu0 0.0
      %685 = vmatprep.subr.mxu0 0.0
      %686 = vmatpush2.msra.mxu0 0.0
      %687 = vmatprep.subr.mxu0 0.0
      %688 = vmatpush2.msra.mxu0 0.0
      %689 = vmatprep.subr.mxu0 0.0
      %690 = vmatpush2.msra.mxu0 0.0
      %691 = vmatprep.subr.mxu0 0.0
      %692 = vmatpush2.msra.mxu0 0.0
      %693 = vmatprep.subr.mxu0 0.0
      %694 = vmatpush2.msra.mxu0 0.0
      %695 = vmatprep.subr.mxu0 0.0
      %696 = vmatpush2.msra.mxu0 0.0
      %697 = vmatprep.mubr.f32.mxu0 0.0
      %v698 = vand.u32 %v266, 4294901760
      %v699 = vsub.f32 %v266, %v698
      %v700 = vand.u32 %v699, 4294901760
      %701 = vmatmul.mubr.f32.gmra.mxu0 %v700
      %v702 = vpop.f32.mrf.mxu0
      %v703 = vadd.f32 %v613, %v702
      %v704 = vpop.f32.mrf.mxu0
      %v705 = vadd.f32 %v615, %v704
      %706 = vdwg.mxu0
      %707 = vmatprep.subr.mxu0 0.0
      %708 = vmatpush1.msra.mxu0 0.0
      %709 = vmatprep.subr.mxu0 0.0
      %710 = vmatpush1.msra.mxu0 0.0
      %711 = vmatprep.subr.mxu0 0.0
      %712 = vmatpush1.msra.mxu0 0.0
      %713 = vmatprep.subr.mxu0 0.0
      %714 = vmatpush1.msra.mxu0 0.0
      %715 = vmatprep.subr.mxu0 0.0
      %716 = vmatpush1.msra.mxu0 0.0
      %717 = vmatprep.subr.mxu0 0.0
      %718 = vmatpush1.msra.mxu0 0.0
      %719 = vmatprep.subr.mxu0 0.0
      %720 = vmatpush1.msra.mxu0 0.0
      %721 = vmatprep.subr.mxu0 0.0
      %722 = vmatpush1.msra.mxu0 0.0
      %v723 = vand.u32 %v263, 4294901760
      %v724 = vsub.f32 %v263, %v723
      %v725 = vand.u32 %v724, 4294901760
      %726 = vmatprep.subr.mxu0 %v725
      %v727 = vand.u32 %v262, 4294901760
      %v728 = vsub.f32 %v262, %v727
      %v729 = vand.u32 %v728, 4294901760
      %730 = vmatpush1.msra.mxu0 %v729
      %v731 = vand.u32 %v261, 4294901760
      %v732 = vsub.f32 %v261, %v731
      %v733 = vand.u32 %v732, 4294901760
      %734 = vmatprep.subr.mxu0 %v733
      %v735 = vand.u32 %v260, 4294901760
      %v736 = vsub.f32 %v260, %v735
      %v737 = vand.u32 %v736, 4294901760
      %738 = vmatpush1.msra.mxu0 %v737
      %v739 = vand.u32 %v259, 4294901760
      %v740 = vsub.f32 %v259, %v739
      %v741 = vand.u32 %v740, 4294901760
      %742 = vmatprep.subr.mxu0 %v741
      %v743 = vand.u32 %v258, 4294901760
      %v744 = vsub.f32 %v258, %v743
      %v745 = vand.u32 %v744, 4294901760
      %746 = vmatpush1.msra.mxu0 %v745
      %v747 = vand.u32 %v257, 4294901760
      %v748 = vsub.f32 %v257, %v747
      %v749 = vand.u32 %v748, 4294901760
      %750 = vmatprep.subr.mxu0 %v749
      %v751 = vand.u32 %v256, 4294901760
      %v752 = vsub.f32 %v256, %v751
      %v753 = vand.u32 %v752, 4294901760
      %754 = vmatpush1.msra.mxu0 %v753
      %v755 = vand.u32 %v255, 4294901760
      %v756 = vsub.f32 %v255, %v755
      %v757 = vand.u32 %v756, 4294901760
      %758 = vmatprep.subr.mxu0 %v757
      %v759 = vand.u32 %v254, 4294901760
      %v760 = vsub.f32 %v254, %v759
      %v761 = vand.u32 %v760, 4294901760
      %762 = vmatpush1.msra.mxu0 %v761
      %v763 = vand.u32 %v253, 4294901760
      %v764 = vsub.f32 %v253, %v763
      %v765 = vand.u32 %v764, 4294901760
      %766 = vmatprep.subr.mxu0 %v765
      %v767 = vand.u32 %v252, 4294901760
      %v768 = vsub.f32 %v252, %v767
      %v769 = vand.u32 %v768, 4294901760
      %770 = vmatpush1.msra.mxu0 %v769
      %v771 = vand.u32 %v251, 4294901760
      %v772 = vsub.f32 %v251, %v771
      %v773 = vand.u32 %v772, 4294901760
      %774 = vmatprep.subr.mxu0 %v773
      %v775 = vand.u32 %v250, 4294901760
      %v776 = vsub.f32 %v250, %v775
      %v777 = vand.u32 %v776, 4294901760
      %778 = vmatpush1.msra.mxu0 %v777
      %v779 = vand.u32 %v249, 4294901760
      %v780 = vsub.f32 %v249, %v779
      %v781 = vand.u32 %v780, 4294901760
      %782 = vmatprep.subr.mxu0 %v781
      %v783 = vand.u32 %v248, 4294901760
      %v784 = vsub.f32 %v248, %v783
      %v785 = vand.u32 %v784, 4294901760
      %786 = vmatpush1.msra.mxu0 %v785
      %787 = vmatprep.subr.mxu0 0.0
      %788 = vmatpush2.msra.mxu0 0.0
      %789 = vmatprep.subr.mxu0 0.0
      %790 = vmatpush2.msra.mxu0 0.0
      %791 = vmatprep.subr.mxu0 0.0
      %792 = vmatpush2.msra.mxu0 0.0
      %793 = vmatprep.subr.mxu0 0.0
      %794 = vmatpush2.msra.mxu0 0.0
      %795 = vmatprep.subr.mxu0 0.0
      %796 = vmatpush2.msra.mxu0 0.0
      %797 = vmatprep.subr.mxu0 0.0
      %798 = vmatpush2.msra.mxu0 0.0
      %799 = vmatprep.subr.mxu0 0.0
      %800 = vmatpush2.msra.mxu0 0.0
      %801 = vmatprep.subr.mxu0 0.0
      %802 = vmatpush2.msra.mxu0 0.0
      %803 = vmatprep.subr.mxu0 0.0
      %804 = vmatpush2.msra.mxu0 0.0
      %805 = vmatprep.subr.mxu0 0.0
      %806 = vmatpush2.msra.mxu0 0.0
      %807 = vmatprep.subr.mxu0 0.0
      %808 = vmatpush2.msra.mxu0 0.0
      %809 = vmatprep.subr.mxu0 0.0
      %810 = vmatpush2.msra.mxu0 0.0
      %811 = vmatprep.subr.mxu0 0.0
      %812 = vmatpush2.msra.mxu0 0.0
      %813 = vmatprep.subr.mxu0 0.0
      %814 = vmatpush2.msra.mxu0 0.0
      %815 = vmatprep.subr.mxu0 0.0
      %816 = vmatpush2.msra.mxu0 0.0
      %817 = vmatprep.subr.mxu0 0.0
      %818 = vmatpush2.msra.mxu0 0.0
      %819 = vmatprep.mubr.f32.mxu0 0.0
      %v820 = vand.u32 %v266, 4294901760
      %821 = vmatmul.mubr.f32.gmra.mxu0 %v820
      %v822 = vpop.f32.mrf.mxu0
      %v823 = vadd.f32 %v703, %v822
      %v824 = vpop.f32.mrf.mxu0
      %v825 = vadd.f32 %v705, %v824
      %826 = vdwg.mxu0
      %827 = vmatprep.subr.mxu0 0.0
      %828 = vmatpush1.msra.mxu0 0.0
      %829 = vmatprep.subr.mxu0 0.0
      %830 = vmatpush1.msra.mxu0 0.0
      %831 = vmatprep.subr.mxu0 0.0
      %832 = vmatpush1.msra.mxu0 0.0
      %833 = vmatprep.subr.mxu0 0.0
      %834 = vmatpush1.msra.mxu0 0.0
      %835 = vmatprep.subr.mxu0 0.0
      %836 = vmatpush1.msra.mxu0 0.0
      %837 = vmatprep.subr.mxu0 0.0
      %838 = vmatpush1.msra.mxu0 0.0
      %839 = vmatprep.subr.mxu0 0.0
      %840 = vmatpush1.msra.mxu0 0.0
      %841 = vmatprep.subr.mxu0 0.0
      %842 = vmatpush1.msra.mxu0 0.0
      %v843 = vand.u32 %v263, 4294901760
      %844 = vmatprep.subr.mxu0 %v843
      %v845 = vand.u32 %v262, 4294901760
      %846 = vmatpush1.msra.mxu0 %v845
      %v847 = vand.u32 %v261, 4294901760
      %848 = vmatprep.subr.mxu0 %v847
      %v849 = vand.u32 %v260, 4294901760
      %850 = vmatpush1.msra.mxu0 %v849
      %v851 = vand.u32 %v259, 4294901760
      %852 = vmatprep.subr.mxu0 %v851
      %v853 = vand.u32 %v258, 4294901760
      %854 = vmatpush1.msra.mxu0 %v853
      %v855 = vand.u32 %v257, 4294901760
      %856 = vmatprep.subr.mxu0 %v855
      %v857 = vand.u32 %v256, 4294901760
      %858 = vmatpush1.msra.mxu0 %v857
      %v859 = vand.u32 %v255, 4294901760
      %860 = vmatprep.subr.mxu0 %v859
      %v861 = vand.u32 %v254, 4294901760
      %862 = vmatpush1.msra.mxu0 %v861
      %v863 = vand.u32 %v253, 4294901760
      %864 = vmatprep.subr.mxu0 %v863
      %v865 = vand.u32 %v252, 4294901760
      %866 = vmatpush1.msra.mxu0 %v865
      %v867 = vand.u32 %v251, 4294901760
      %868 = vmatprep.subr.mxu0 %v867
      %v869 = vand.u32 %v250, 4294901760
      %870 = vmatpush1.msra.mxu0 %v869
      %v871 = vand.u32 %v249, 4294901760
      %872 = vmatprep.subr.mxu0 %v871
      %v873 = vand.u32 %v248, 4294901760
      %874 = vmatpush1.msra.mxu0 %v873
      %875 = vmatprep.subr.mxu0 0.0
      %876 = vmatpush2.msra.mxu0 0.0
      %877 = vmatprep.subr.mxu0 0.0
      %878 = vmatpush2.msra.mxu0 0.0
      %879 = vmatprep.subr.mxu0 0.0
      %880 = vmatpush2.msra.mxu0 0.0
      %881 = vmatprep.subr.mxu0 0.0
      %882 = vmatpush2.msra.mxu0 0.0
      %883 = vmatprep.subr.mxu0 0.0
      %884 = vmatpush2.msra.mxu0 0.0
      %885 = vmatprep.subr.mxu0 0.0
      %886 = vmatpush2.msra.mxu0 0.0
      %887 = vmatprep.subr.mxu0 0.0
      %888 = vmatpush2.msra.mxu0 0.0
      %889 = vmatprep.subr.mxu0 0.0
      %890 = vmatpush2.msra.mxu0 0.0
      %891 = vmatprep.subr.mxu0 0.0
      %892 = vmatpush2.msra.mxu0 0.0
      %893 = vmatprep.subr.mxu0 0.0
      %894 = vmatpush2.msra.mxu0 0.0
      %895 = vmatprep.subr.mxu0 0.0
      %896 = vmatpush2.msra.mxu0 0.0
      %897 = vmatprep.subr.mxu0 0.0
      %898 = vmatpush2.msra.mxu0 0.0
      %899 = vmatprep.subr.mxu0 0.0
      %900 = vmatpush2.msra.mxu0 0.0
      %901 = vmatprep.subr.mxu0 0.0
      %902 = vmatpush2.msra.mxu0 0.0
      %903 = vmatprep.subr.mxu0 0.0
      %904 = vmatpush2.msra.mxu0 0.0
      %905 = vmatprep.subr.mxu0 0.0
      %906 = vmatpush2.msra.mxu0 0.0
      %907 = vmatprep.mubr.f32.mxu0 0.0
      %v908 = vand.u32 %v266, 4294901760
      %909 = vmatmul.mubr.f32.gmra.mxu0 %v908
      %v910 = vpop.f32.mrf.mxu0
      %v911 = vadd.f32 %v823, %v910
      %v912 = vpop.f32.mrf.mxu0
      %v913 = vadd.f32 %v825, %v912
      %914 = vdwg.mxu0
      %v915 = vmul.f32 %v911, %v911
      %v916 = vmul.f32 %v913, %v913
      %v917 = vadd.f32 %v915, %v916
      %v918 = vrsqrt.pop %v917
      %v919 = vmul.f32 %v917, %v918
      %vm920 = vcmp.eq.f32.partialorder %v917, inf
      %v921 = vsel %vm920, %v917, %v919
      %vm922 = vcmp.eq.f32.partialorder %v917, 0.0
      %v923 = vand.u32 %v917, 2147483648
      %v924 = vsel %vm922, %v923, %v921
      %vm925 = vcmask 510976
      %v926 = vsel %vm925, %v924, 0.0
      %v927 = vrot.slane %v926, 4
      %v928 = vadd.f32 %v926, %v927
      %v929 = vrot.slane %v928, 2
      %v930 = vadd.f32 %v928, %v929
      %v931 = vrot.slane %v930, 1
      %v932 = vadd.f32 %v930, %v931
      %v933 = vld [vmem:[%s2] sm:$0xff]
      %v934 = vld [vmem:[%s2 + $0x8] sm:$0xff]
      %v935 = vld [vmem:[%s2 + $0x10] sm:$0xff]
      %v936 = vld [vmem:[%s2 + $0x18] sm:$0xff]
      %v937 = vld [vmem:[%s2 + $0x20] sm:$0xff]
      %v938 = vld [vmem:[%s2 + $0x28] sm:$0xff]
      %v939 = vld [vmem:[%s2 + $0x30] sm:$0xff]
      %v940 = vld [vmem:[%s2 + $0x38] sm:$0x7f]
      %v941 = vld [vmem:[%s3] sm:$0x1]
      %vm942 = vcmask 515072
      %v944 = vsel %vm942, %v932, 0
      %vm946 = vcmask 1046528
      %v948 = vsel %vm946, %v940, 0
      %950 = vmatprep.subr.mxu0 0.0
      %951 = vmatpush1.msra.mxu0 0.0
      %952 = vmatprep.subr.mxu0 0.0
      %953 = vmatpush1.msra.mxu0 0.0
      %954 = vmatprep.subr.mxu0 0.0
      %955 = vmatpush1.msra.mxu0 0.0
      %956 = vmatprep.subr.mxu0 0.0
      %957 = vmatpush1.msra.mxu0 0.0
      %958 = vmatprep.subr.mxu0 0.0
      %959 = vmatpush1.msra.mxu0 0.0
      %960 = vmatprep.subr.mxu0 0.0
      %961 = vmatpush1.msra.mxu0 0.0
      %962 = vmatprep.subr.mxu0 0.0
      %963 = vmatpush1.msra.mxu0 0.0
      %964 = vmatprep.subr.mxu0 0.0
      %965 = vmatpush1.msra.mxu0 0.0
      %966 = vmatprep.subr.mxu0 0.0
      %v967 = vand.u32 %v948, 4294901760
      %968 = vmatpush1.msra.mxu0 %v967
      %969 = vmatprep.subr.mxu0 0.0
      %v970 = vand.u32 %v939, 4294901760
      %971 = vmatpush1.msra.mxu0 %v970
      %972 = vmatprep.subr.mxu0 0.0
      %v973 = vand.u32 %v938, 4294901760
      %974 = vmatpush1.msra.mxu0 %v973
      %975 = vmatprep.subr.mxu0 0.0
      %v976 = vand.u32 %v937, 4294901760
      %977 = vmatpush1.msra.mxu0 %v976
      %978 = vmatprep.subr.mxu0 0.0
      %v979 = vand.u32 %v936, 4294901760
      %980 = vmatpush1.msra.mxu0 %v979
      %981 = vmatprep.subr.mxu0 0.0
      %v982 = vand.u32 %v935, 4294901760
      %983 = vmatpush1.msra.mxu0 %v982
      %984 = vmatprep.subr.mxu0 0.0
      %v985 = vand.u32 %v934, 4294901760
      %986 = vmatpush1.msra.mxu0 %v985
      %987 = vmatprep.subr.mxu0 0.0
      %v988 = vand.u32 %v933, 4294901760
      %989 = vmatpush1.msra.mxu0 %v988
      %990 = vmatprep.subr.mxu0 0.0
      %991 = vmatpush2.msra.mxu0 0.0
      %992 = vmatprep.subr.mxu0 0.0
      %993 = vmatpush2.msra.mxu0 0.0
      %994 = vmatprep.subr.mxu0 0.0
      %995 = vmatpush2.msra.mxu0 0.0
      %996 = vmatprep.subr.mxu0 0.0
      %997 = vmatpush2.msra.mxu0 0.0
      %998 = vmatprep.subr.mxu0 0.0
      %999 = vmatpush2.msra.mxu0 0.0
      %1000 = vmatprep.subr.mxu0 0.0
      %1001 = vmatpush2.msra.mxu0 0.0
      %1002 = vmatprep.subr.mxu0 0.0
      %1003 = vmatpush2.msra.mxu0 0.0
      %1004 = vmatprep.subr.mxu0 0.0
      %1005 = vmatpush2.msra.mxu0 0.0
      %1006 = vmatprep.subr.mxu0 0.0
      %1007 = vmatpush2.msra.mxu0 0.0
      %1008 = vmatprep.subr.mxu0 0.0
      %1009 = vmatpush2.msra.mxu0 0.0
      %1010 = vmatprep.subr.mxu0 0.0
      %1011 = vmatpush2.msra.mxu0 0.0
      %1012 = vmatprep.subr.mxu0 0.0
      %1013 = vmatpush2.msra.mxu0 0.0
      %1014 = vmatprep.subr.mxu0 0.0
      %1015 = vmatpush2.msra.mxu0 0.0
      %1016 = vmatprep.subr.mxu0 0.0
      %1017 = vmatpush2.msra.mxu0 0.0
      %1018 = vmatprep.subr.mxu0 0.0
      %1019 = vmatpush2.msra.mxu0 0.0
      %1020 = vmatprep.subr.mxu0 0.0
      %1021 = vmatpush2.msra.mxu0 0.0
      %1022 = vmatprep.mubr.f32.mxu0 0.0
      %v1023 = vand.u32 %v944, 4294901760
      %v1024 = vsub.f32 %v944, %v1023
      %v1025 = vand.u32 %v1024, 4294901760
      %v1026 = vsub.f32 %v1024, %v1025
      %v1027 = vand.u32 %v1026, 4294901760
      %1028 = vmatmul.mubr.f32.gmra.mxu0 %v1027
      %v1029 = vpop.f32.mrf.mxu0
      %v1030 = vadd.f32 %v941, %v1029
      %v1031 = vpop.f32.mrf.mxu0
      %1032 = vdwg.mxu0
      %1033 = vmatprep.subr.mxu0 0.0
      %1034 = vmatpush1.msra.mxu0 0.0
      %1035 = vmatprep.subr.mxu0 0.0
      %1036 = vmatpush1.msra.mxu0 0.0
      %1037 = vmatprep.subr.mxu0 0.0
      %1038 = vmatpush1.msra.mxu0 0.0
      %1039 = vmatprep.subr.mxu0 0.0
      %1040 = vmatpush1.msra.mxu0 0.0
      %1041 = vmatprep.subr.mxu0 0.0
      %1042 = vmatpush1.msra.mxu0 0.0
      %1043 = vmatprep.subr.mxu0 0.0
      %1044 = vmatpush1.msra.mxu0 0.0
      %1045 = vmatprep.subr.mxu0 0.0
      %1046 = vmatpush1.msra.mxu0 0.0
      %1047 = vmatprep.subr.mxu0 0.0
      %1048 = vmatpush1.msra.mxu0 0.0
      %1049 = vmatprep.subr.mxu0 0.0
      %v1050 = vand.u32 %v948, 4294901760
      %v1051 = vsub.f32 %v948, %v1050
      %v1052 = vand.u32 %v1051, 4294901760
      %v1053 = vsub.f32 %v1051, %v1052
      %v1054 = vand.u32 %v1053, 4294901760
      %1055 = vmatpush1.msra.mxu0 %v1054
      %1056 = vmatprep.subr.mxu0 0.0
      %v1057 = vand.u32 %v939, 4294901760
      %v1058 = vsub.f32 %v939, %v1057
      %v1059 = vand.u32 %v1058, 4294901760
      %v1060 = vsub.f32 %v1058, %v1059
      %v1061 = vand.u32 %v1060, 4294901760
      %1062 = vmatpush1.msra.mxu0 %v1061
      %1063 = vmatprep.subr.mxu0 0.0
      %v1064 = vand.u32 %v938, 4294901760
      %v1065 = vsub.f32 %v938, %v1064
      %v1066 = vand.u32 %v1065, 4294901760
      %v1067 = vsub.f32 %v1065, %v1066
      %v1068 = vand.u32 %v1067, 4294901760
      %1069 = vmatpush1.msra.mxu0 %v1068
      %1070 = vmatprep.subr.mxu0 0.0
      %v1071 = vand.u32 %v937, 4294901760
      %v1072 = vsub.f32 %v937, %v1071
      %v1073 = vand.u32 %v1072, 4294901760
      %v1074 = vsub.f32 %v1072, %v1073
      %v1075 = vand.u32 %v1074, 4294901760
      %1076 = vmatpush1.msra.mxu0 %v1075
      %1077 = vmatprep.subr.mxu0 0.0
      %v1078 = vand.u32 %v936, 4294901760
      %v1079 = vsub.f32 %v936, %v1078
      %v1080 = vand.u32 %v1079, 4294901760
      %v1081 = vsub.f32 %v1079, %v1080
      %v1082 = vand.u32 %v1081, 4294901760
      %1083 = vmatpush1.msra.mxu0 %v1082
      %1084 = vmatprep.subr.mxu0 0.0
      %v1085 = vand.u32 %v935, 4294901760
      %v1086 = vsub.f32 %v935, %v1085
      %v1087 = vand.u32 %v1086, 4294901760
      %v1088 = vsub.f32 %v1086, %v1087
      %v1089 = vand.u32 %v1088, 4294901760
      %1090 = vmatpush1.msra.mxu0 %v1089
      %1091 = vmatprep.subr.mxu0 0.0
      %v1092 = vand.u32 %v934, 4294901760
      %v1093 = vsub.f32 %v934, %v1092
      %v1094 = vand.u32 %v1093, 4294901760
      %v1095 = vsub.f32 %v1093, %v1094
      %v1096 = vand.u32 %v1095, 4294901760
      %1097 = vmatpush1.msra.mxu0 %v1096
      %1098 = vmatprep.subr.mxu0 0.0
      %v1099 = vand.u32 %v933, 4294901760
      %v1100 = vsub.f32 %v933, %v1099
      %v1101 = vand.u32 %v1100, 4294901760
      %v1102 = vsub.f32 %v1100, %v1101
      %v1103 = vand.u32 %v1102, 4294901760
      %1104 = vmatpush1.msra.mxu0 %v1103
      %1105 = vmatprep.subr.mxu0 0.0
      %1106 = vmatpush2.msra.mxu0 0.0
      %1107 = vmatprep.subr.mxu0 0.0
      %1108 = vmatpush2.msra.mxu0 0.0
      %1109 = vmatprep.subr.mxu0 0.0
      %1110 = vmatpush2.msra.mxu0 0.0
      %1111 = vmatprep.subr.mxu0 0.0
      %1112 = vmatpush2.msra.mxu0 0.0
      %1113 = vmatprep.subr.mxu0 0.0
      %1114 = vmatpush2.msra.mxu0 0.0
      %1115 = vmatprep.subr.mxu0 0.0
      %1116 = vmatpush2.msra.mxu0 0.0
      %1117 = vmatprep.subr.mxu0 0.0
      %1118 = vmatpush2.msra.mxu0 0.0
      %1119 = vmatprep.subr.mxu0 0.0
      %1120 = vmatpush2.msra.mxu0 0.0
      %1121 = vmatprep.subr.mxu0 0.0
      %1122 = vmatpush2.msra.mxu0 0.0
      %1123 = vmatprep.subr.mxu0 0.0
      %1124 = vmatpush2.msra.mxu0 0.0
      %1125 = vmatprep.subr.mxu0 0.0
      %1126 = vmatpush2.msra.mxu0 0.0
      %1127 = vmatprep.subr.mxu0 0.0
      %1128 = vmatpush2.msra.mxu0 0.0
      %1129 = vmatprep.subr.mxu0 0.0
      %1130 = vmatpush2.msra.mxu0 0.0
      %1131 = vmatprep.subr.mxu0 0.0
      %1132 = vmatpush2.msra.mxu0 0.0
      %1133 = vmatprep.subr.mxu0 0.0
      %1134 = vmatpush2.msra.mxu0 0.0
      %1135 = vmatprep.subr.mxu0 0.0
      %1136 = vmatpush2.msra.mxu0 0.0
      %1137 = vmatprep.mubr.f32.mxu0 0.0
      %v1138 = vand.u32 %v944, 4294901760
      %1139 = vmatmul.mubr.f32.gmra.mxu0 %v1138
      %v1140 = vpop.f32.mrf.mxu0
      %v1141 = vadd.f32 %v1030, %v1140
      %v1142 = vpop.f32.mrf.mxu0
      %1143 = vdwg.mxu0
      %1144 = vmatprep.subr.mxu0 0.0
      %1145 = vmatpush1.msra.mxu0 0.0
      %1146 = vmatprep.subr.mxu0 0.0
      %1147 = vmatpush1.msra.mxu0 0.0
      %1148 = vmatprep.subr.mxu0 0.0
      %1149 = vmatpush1.msra.mxu0 0.0
      %1150 = vmatprep.subr.mxu0 0.0
      %1151 = vmatpush1.msra.mxu0 0.0
      %1152 = vmatprep.subr.mxu0 0.0
      %1153 = vmatpush1.msra.mxu0 0.0
      %1154 = vmatprep.subr.mxu0 0.0
      %1155 = vmatpush1.msra.mxu0 0.0
      %1156 = vmatprep.subr.mxu0 0.0
      %1157 = vmatpush1.msra.mxu0 0.0
      %1158 = vmatprep.subr.mxu0 0.0
      %1159 = vmatpush1.msra.mxu0 0.0
      %1160 = vmatprep.subr.mxu0 0.0
      %v1161 = vand.u32 %v948, 4294901760
      %v1162 = vsub.f32 %v948, %v1161
      %1163 = vmatpush1.msra.mxu0 %v1162
      %1164 = vmatprep.subr.mxu0 0.0
      %v1165 = vand.u32 %v939, 4294901760
      %v1166 = vsub.f32 %v939, %v1165
      %1167 = vmatpush1.msra.mxu0 %v1166
      %1168 = vmatprep.subr.mxu0 0.0
      %v1169 = vand.u32 %v938, 4294901760
      %v1170 = vsub.f32 %v938, %v1169
      %1171 = vmatpush1.msra.mxu0 %v1170
      %1172 = vmatprep.subr.mxu0 0.0
      %v1173 = vand.u32 %v937, 4294901760
      %v1174 = vsub.f32 %v937, %v1173
      %1175 = vmatpush1.msra.mxu0 %v1174
      %1176 = vmatprep.subr.mxu0 0.0
      %v1177 = vand.u32 %v936, 4294901760
      %v1178 = vsub.f32 %v936, %v1177
      %1179 = vmatpush1.msra.mxu0 %v1178
      %1180 = vmatprep.subr.mxu0 0.0
      %v1181 = vand.u32 %v935, 4294901760
      %v1182 = vsub.f32 %v935, %v1181
      %1183 = vmatpush1.msra.mxu0 %v1182
      %1184 = vmatprep.subr.mxu0 0.0
      %v1185 = vand.u32 %v934, 4294901760
      %v1186 = vsub.f32 %v934, %v1185
      %1187 = vmatpush1.msra.mxu0 %v1186
      %1188 = vmatprep.subr.mxu0 0.0
      %v1189 = vand.u32 %v933, 4294901760
      %v1190 = vsub.f32 %v933, %v1189
      %1191 = vmatpush1.msra.mxu0 %v1190
      %1192 = vmatprep.subr.mxu0 0.0
      %1193 = vmatpush2.msra.mxu0 0.0
      %1194 = vmatprep.subr.mxu0 0.0
      %1195 = vmatpush2.msra.mxu0 0.0
      %1196 = vmatprep.subr.mxu0 0.0
      %1197 = vmatpush2.msra.mxu0 0.0
      %1198 = vmatprep.subr.mxu0 0.0
      %1199 = vmatpush2.msra.mxu0 0.0
      %1200 = vmatprep.subr.mxu0 0.0
      %1201 = vmatpush2.msra.mxu0 0.0
      %1202 = vmatprep.subr.mxu0 0.0
      %1203 = vmatpush2.msra.mxu0 0.0
      %1204 = vmatprep.subr.mxu0 0.0
      %1205 = vmatpush2.msra.mxu0 0.0
      %1206 = vmatprep.subr.mxu0 0.0
      %1207 = vmatpush2.msra.mxu0 0.0
      %1208 = vmatprep.subr.mxu0 0.0
      %1209 = vmatpush2.msra.mxu0 0.0
      %1210 = vmatprep.subr.mxu0 0.0
      %1211 = vmatpush2.msra.mxu0 0.0
      %1212 = vmatprep.subr.mxu0 0.0
      %1213 = vmatpush2.msra.mxu0 0.0
      %1214 = vmatprep.subr.mxu0 0.0
      %1215 = vmatpush2.msra.mxu0 0.0
      %1216 = vmatprep.subr.mxu0 0.0
      %1217 = vmatpush2.msra.mxu0 0.0
      %1218 = vmatprep.subr.mxu0 0.0
      %1219 = vmatpush2.msra.mxu0 0.0
      %1220 = vmatprep.subr.mxu0 0.0
      %1221 = vmatpush2.msra.mxu0 0.0
      %1222 = vmatprep.subr.mxu0 0.0
      %1223 = vmatpush2.msra.mxu0 0.0
      %1224 = vmatprep.mubr.f32.mxu0 0.0
      %v1225 = vand.u32 %v944, 4294901760
      %v1226 = vsub.f32 %v944, %v1225
      %1227 = vmatmul.mubr.f32.gmra.mxu0 %v1226
      %v1228 = vpop.f32.mrf.mxu0
      %v1229 = vadd.f32 %v1141, %v1228
      %v1230 = vpop.f32.mrf.mxu0
      %1231 = vdwg.mxu0
      %1232 = vmatprep.subr.mxu0 0.0
      %1233 = vmatpush1.msra.mxu0 0.0
      %1234 = vmatprep.subr.mxu0 0.0
      %1235 = vmatpush1.msra.mxu0 0.0
      %1236 = vmatprep.subr.mxu0 0.0
      %1237 = vmatpush1.msra.mxu0 0.0
      %1238 = vmatprep.subr.mxu0 0.0
      %1239 = vmatpush1.msra.mxu0 0.0
      %1240 = vmatprep.subr.mxu0 0.0
      %1241 = vmatpush1.msra.mxu0 0.0
      %1242 = vmatprep.subr.mxu0 0.0
      %1243 = vmatpush1.msra.mxu0 0.0
      %1244 = vmatprep.subr.mxu0 0.0
      %1245 = vmatpush1.msra.mxu0 0.0
      %1246 = vmatprep.subr.mxu0 0.0
      %1247 = vmatpush1.msra.mxu0 0.0
      %1248 = vmatprep.subr.mxu0 0.0
      %v1249 = vand.u32 %v948, 4294901760
      %1250 = vmatpush1.msra.mxu0 %v1249
      %1251 = vmatprep.subr.mxu0 0.0
      %v1252 = vand.u32 %v939, 4294901760
      %1253 = vmatpush1.msra.mxu0 %v1252
      %1254 = vmatprep.subr.mxu0 0.0
      %v1255 = vand.u32 %v938, 4294901760
      %1256 = vmatpush1.msra.mxu0 %v1255
      %1257 = vmatprep.subr.mxu0 0.0
      %v1258 = vand.u32 %v937, 4294901760
      %1259 = vmatpush1.msra.mxu0 %v1258
      %1260 = vmatprep.subr.mxu0 0.0
      %v1261 = vand.u32 %v936, 4294901760
      %1262 = vmatpush1.msra.mxu0 %v1261
      %1263 = vmatprep.subr.mxu0 0.0
      %v1264 = vand.u32 %v935, 4294901760
      %1265 = vmatpush1.msra.mxu0 %v1264
      %1266 = vmatprep.subr.mxu0 0.0
      %v1267 = vand.u32 %v934, 4294901760
      %1268 = vmatpush1.msra.mxu0 %v1267
      %1269 = vmatprep.subr.mxu0 0.0
      %v1270 = vand.u32 %v933, 4294901760
      %1271 = vmatpush1.msra.mxu0 %v1270
      %1272 = vmatprep.subr.mxu0 0.0
      %1273 = vmatpush2.msra.mxu0 0.0
      %1274 = vmatprep.subr.mxu0 0.0
      %1275 = vmatpush2.msra.mxu0 0.0
      %1276 = vmatprep.subr.mxu0 0.0
      %1277 = vmatpush2.msra.mxu0 0.0
      %1278 = vmatprep.subr.mxu0 0.0
      %1279 = vmatpush2.msra.mxu0 0.0
      %1280 = vmatprep.subr.mxu0 0.0
      %1281 = vmatpush2.msra.mxu0 0.0
      %1282 = vmatprep.subr.mxu0 0.0
      %1283 = vmatpush2.msra.mxu0 0.0
      %1284 = vmatprep.subr.mxu0 0.0
      %1285 = vmatpush2.msra.mxu0 0.0
      %1286 = vmatprep.subr.mxu0 0.0
      %1287 = vmatpush2.msra.mxu0 0.0
      %1288 = vmatprep.subr.mxu0 0.0
      %1289 = vmatpush2.msra.mxu0 0.0
      %1290 = vmatprep.subr.mxu0 0.0
      %1291 = vmatpush2.msra.mxu0 0.0
      %1292 = vmatprep.subr.mxu0 0.0
      %1293 = vmatpush2.msra.mxu0 0.0
      %1294 = vmatprep.subr.mxu0 0.0
      %1295 = vmatpush2.msra.mxu0 0.0
      %1296 = vmatprep.subr.mxu0 0.0
      %1297 = vmatpush2.msra.mxu0 0.0
      %1298 = vmatprep.subr.mxu0 0.0
      %1299 = vmatpush2.msra.mxu0 0.0
      %1300 = vmatprep.subr.mxu0 0.0
      %1301 = vmatpush2.msra.mxu0 0.0
      %1302 = vmatprep.subr.mxu0 0.0
      %1303 = vmatpush2.msra.mxu0 0.0
      %1304 = vmatprep.mubr.f32.mxu0 0.0
      %v1305 = vand.u32 %v944, 4294901760
      %v1306 = vsub.f32 %v944, %v1305
      %v1307 = vand.u32 %v1306, 4294901760
      %1308 = vmatmul.mubr.f32.gmra.mxu0 %v1307
      %v1309 = vpop.f32.mrf.mxu0
      %v1310 = vadd.f32 %v1229, %v1309
      %v1311 = vpop.f32.mrf.mxu0
      %1312 = vdwg.mxu0
      %1313 = vmatprep.subr.mxu0 0.0
      %1314 = vmatpush1.msra.mxu0 0.0
      %1315 = vmatprep.subr.mxu0 0.0
      %1316 = vmatpush1.msra.mxu0 0.0
      %1317 = vmatprep.subr.mxu0 0.0
      %1318 = vmatpush1.msra.mxu0 0.0
      %1319 = vmatprep.subr.mxu0 0.0
      %1320 = vmatpush1.msra.mxu0 0.0
      %1321 = vmatprep.subr.mxu0 0.0
      %1322 = vmatpush1.msra.mxu0 0.0
      %1323 = vmatprep.subr.mxu0 0.0
      %1324 = vmatpush1.msra.mxu0 0.0
      %1325 = vmatprep.subr.mxu0 0.0
      %1326 = vmatpush1.msra.mxu0 0.0
      %1327 = vmatprep.subr.mxu0 0.0
      %1328 = vmatpush1.msra.mxu0 0.0
      %1329 = vmatprep.subr.mxu0 0.0
      %v1330 = vand.u32 %v948, 4294901760
      %v1331 = vsub.f32 %v948, %v1330
      %v1332 = vand.u32 %v1331, 4294901760
      %1333 = vmatpush1.msra.mxu0 %v1332
      %1334 = vmatprep.subr.mxu0 0.0
      %v1335 = vand.u32 %v939, 4294901760
      %v1336 = vsub.f32 %v939, %v1335
      %v1337 = vand.u32 %v1336, 4294901760
      %1338 = vmatpush1.msra.mxu0 %v1337
      %1339 = vmatprep.subr.mxu0 0.0
      %v1340 = vand.u32 %v938, 4294901760
      %v1341 = vsub.f32 %v938, %v1340
      %v1342 = vand.u32 %v1341, 4294901760
      %1343 = vmatpush1.msra.mxu0 %v1342
      %1344 = vmatprep.subr.mxu0 0.0
      %v1345 = vand.u32 %v937, 4294901760
      %v1346 = vsub.f32 %v937, %v1345
      %v1347 = vand.u32 %v1346, 4294901760
      %1348 = vmatpush1.msra.mxu0 %v1347
      %1349 = vmatprep.subr.mxu0 0.0
      %v1350 = vand.u32 %v936, 4294901760
      %v1351 = vsub.f32 %v936, %v1350
      %v1352 = vand.u32 %v1351, 4294901760
      %1353 = vmatpush1.msra.mxu0 %v1352
      %1354 = vmatprep.subr.mxu0 0.0
      %v1355 = vand.u32 %v935, 4294901760
      %v1356 = vsub.f32 %v935, %v1355
      %v1357 = vand.u32 %v1356, 4294901760
      %1358 = vmatpush1.msra.mxu0 %v1357
      %1359 = vmatprep.subr.mxu0 0.0
      %v1360 = vand.u32 %v934, 4294901760
      %v1361 = vsub.f32 %v934, %v1360
      %v1362 = vand.u32 %v1361, 4294901760
      %1363 = vmatpush1.msra.mxu0 %v1362
      %1364 = vmatprep.subr.mxu0 0.0
      %v1365 = vand.u32 %v933, 4294901760
      %v1366 = vsub.f32 %v933, %v1365
      %v1367 = vand.u32 %v1366, 4294901760
      %1368 = vmatpush1.msra.mxu0 %v1367
      %1369 = vmatprep.subr.mxu0 0.0
      %1370 = vmatpush2.msra.mxu0 0.0
      %1371 = vmatprep.subr.mxu0 0.0
      %1372 = vmatpush2.msra.mxu0 0.0
      %1373 = vmatprep.subr.mxu0 0.0
      %1374 = vmatpush2.msra.mxu0 0.0
      %1375 = vmatprep.subr.mxu0 0.0
      %1376 = vmatpush2.msra.mxu0 0.0
      %1377 = vmatprep.subr.mxu0 0.0
      %1378 = vmatpush2.msra.mxu0 0.0
      %1379 = vmatprep.subr.mxu0 0.0
      %1380 = vmatpush2.msra.mxu0 0.0
      %1381 = vmatprep.subr.mxu0 0.0
      %1382 = vmatpush2.msra.mxu0 0.0
      %1383 = vmatprep.subr.mxu0 0.0
      %1384 = vmatpush2.msra.mxu0 0.0
      %1385 = vmatprep.subr.mxu0 0.0
      %1386 = vmatpush2.msra.mxu0 0.0
      %1387 = vmatprep.subr.mxu0 0.0
      %1388 = vmatpush2.msra.mxu0 0.0
      %1389 = vmatprep.subr.mxu0 0.0
      %1390 = vmatpush2.msra.mxu0 0.0
      %1391 = vmatprep.subr.mxu0 0.0
      %1392 = vmatpush2.msra.mxu0 0.0
      %1393 = vmatprep.subr.mxu0 0.0
      %1394 = vmatpush2.msra.mxu0 0.0
      %1395 = vmatprep.subr.mxu0 0.0
      %1396 = vmatpush2.msra.mxu0 0.0
      %1397 = vmatprep.subr.mxu0 0.0
      %1398 = vmatpush2.msra.mxu0 0.0
      %1399 = vmatprep.subr.mxu0 0.0
      %1400 = vmatpush2.msra.mxu0 0.0
      %1401 = vmatprep.mubr.f32.mxu0 0.0
      %v1402 = vand.u32 %v944, 4294901760
      %1403 = vmatmul.mubr.f32.gmra.mxu0 %v1402
      %v1404 = vpop.f32.mrf.mxu0
      %v1405 = vadd.f32 %v1310, %v1404
      %v1406 = vpop.f32.mrf.mxu0
      %1407 = vdwg.mxu0
      %1408 = vmatprep.subr.mxu0 0.0
      %1409 = vmatpush1.msra.mxu0 0.0
      %1410 = vmatprep.subr.mxu0 0.0
      %1411 = vmatpush1.msra.mxu0 0.0
      %1412 = vmatprep.subr.mxu0 0.0
      %1413 = vmatpush1.msra.mxu0 0.0
      %1414 = vmatprep.subr.mxu0 0.0
      %1415 = vmatpush1.msra.mxu0 0.0
      %1416 = vmatprep.subr.mxu0 0.0
      %1417 = vmatpush1.msra.mxu0 0.0
      %1418 = vmatprep.subr.mxu0 0.0
      %1419 = vmatpush1.msra.mxu0 0.0
      %1420 = vmatprep.subr.mxu0 0.0
      %1421 = vmatpush1.msra.mxu0 0.0
      %1422 = vmatprep.subr.mxu0 0.0
      %1423 = vmatpush1.msra.mxu0 0.0
      %1424 = vmatprep.subr.mxu0 0.0
      %v1425 = vand.u32 %v948, 4294901760
      %1426 = vmatpush1.msra.mxu0 %v1425
      %1427 = vmatprep.subr.mxu0 0.0
      %v1428 = vand.u32 %v939, 4294901760
      %1429 = vmatpush1.msra.mxu0 %v1428
      %1430 = vmatprep.subr.mxu0 0.0
      %v1431 = vand.u32 %v938, 4294901760
      %1432 = vmatpush1.msra.mxu0 %v1431
      %1433 = vmatprep.subr.mxu0 0.0
      %v1434 = vand.u32 %v937, 4294901760
      %1435 = vmatpush1.msra.mxu0 %v1434
      %1436 = vmatprep.subr.mxu0 0.0
      %v1437 = vand.u32 %v936, 4294901760
      %1438 = vmatpush1.msra.mxu0 %v1437
      %1439 = vmatprep.subr.mxu0 0.0
      %v1440 = vand.u32 %v935, 4294901760
      %1441 = vmatpush1.msra.mxu0 %v1440
      %1442 = vmatprep.subr.mxu0 0.0
      %v1443 = vand.u32 %v934, 4294901760
      %1444 = vmatpush1.msra.mxu0 %v1443
      %1445 = vmatprep.subr.mxu0 0.0
      %v1446 = vand.u32 %v933, 4294901760
      %1447 = vmatpush1.msra.mxu0 %v1446
      %1448 = vmatprep.subr.mxu0 0.0
      %1449 = vmatpush2.msra.mxu0 0.0
      %1450 = vmatprep.subr.mxu0 0.0
      %1451 = vmatpush2.msra.mxu0 0.0
      %1452 = vmatprep.subr.mxu0 0.0
      %1453 = vmatpush2.msra.mxu0 0.0
      %1454 = vmatprep.subr.mxu0 0.0
      %1455 = vmatpush2.msra.mxu0 0.0
      %1456 = vmatprep.subr.mxu0 0.0
      %1457 = vmatpush2.msra.mxu0 0.0
      %1458 = vmatprep.subr.mxu0 0.0
      %1459 = vmatpush2.msra.mxu0 0.0
      %1460 = vmatprep.subr.mxu0 0.0
      %1461 = vmatpush2.msra.mxu0 0.0
      %1462 = vmatprep.subr.mxu0 0.0
      %1463 = vmatpush2.msra.mxu0 0.0
      %1464 = vmatprep.subr.mxu0 0.0
      %1465 = vmatpush2.msra.mxu0 0.0
      %1466 = vmatprep.subr.mxu0 0.0
      %1467 = vmatpush2.msra.mxu0 0.0
      %1468 = vmatprep.subr.mxu0 0.0
      %1469 = vmatpush2.msra.mxu0 0.0
      %1470 = vmatprep.subr.mxu0 0.0
      %1471 = vmatpush2.msra.mxu0 0.0
      %1472 = vmatprep.subr.mxu0 0.0
      %1473 = vmatpush2.msra.mxu0 0.0
      %1474 = vmatprep.subr.mxu0 0.0
      %1475 = vmatpush2.msra.mxu0 0.0
      %1476 = vmatprep.subr.mxu0 0.0
      %1477 = vmatpush2.msra.mxu0 0.0
      %1478 = vmatprep.subr.mxu0 0.0
      %1479 = vmatpush2.msra.mxu0 0.0
      %1480 = vmatprep.mubr.f32.mxu0 0.0
      %v1481 = vand.u32 %v944, 4294901760
      %1482 = vmatmul.mubr.f32.gmra.mxu0 %v1481
      %v1483 = vpop.f32.mrf.mxu0
      %v1484 = vadd.f32 %v1405, %v1483
      %v1485 = vpop.f32.mrf.mxu0
      %1486 = vdwg.mxu0
      %vm1487 = vcmp.gt.f32.partialorder %v1484, 0.0
      %v1488 = vmin.f32 %v1484, 0.0
      %v1489 = vmul.f32 %v1488, 1.442695
      %v1490 = vpow.pop %v1489
      %v1491 = vsub.f32 %v1490, 1.0
      %v1492 = vsel %vm1487, %v1484, %v1491
      %v1493 = vld [vmem:[%s4] sm:$0xff]
      %v1494 = vld [vmem:[%s4 + $0x8] sm:$0xff]
      %v1495 = vld [vmem:[%s4 + $0x10] sm:$0xff]
      %v1496 = vld [vmem:[%s4 + $0x18] sm:$0xff]
      %v1497 = vld [vmem:[#allocation2] sm:$0x1]
      %vm1498 = vcmask 261120
      %v1500 = vsel %vm1498, %v1492, 0
      %1502 = vmatprep.subr.mxu0 0.0
      %1503 = vmatpush1.msra.mxu0 0.0
      %1504 = vmatprep.subr.mxu0 0.0
      %1505 = vmatpush1.msra.mxu0 0.0
      %1506 = vmatprep.subr.mxu0 0.0
      %1507 = vmatpush1.msra.mxu0 0.0
      %1508 = vmatprep.subr.mxu0 0.0
      %1509 = vmatpush1.msra.mxu0 0.0
      %1510 = vmatprep.subr.mxu0 0.0
      %1511 = vmatpush1.msra.mxu0 0.0
      %1512 = vmatprep.subr.mxu0 0.0
      %1513 = vmatpush1.msra.mxu0 0.0
      %1514 = vmatprep.subr.mxu0 0.0
      %1515 = vmatpush1.msra.mxu0 0.0
      %1516 = vmatprep.subr.mxu0 0.0
      %1517 = vmatpush1.msra.mxu0 0.0
      %1518 = vmatprep.subr.mxu0 0.0
      %1519 = vmatpush1.msra.mxu0 0.0
      %1520 = vmatprep.subr.mxu0 0.0
      %1521 = vmatpush1.msra.mxu0 0.0
      %1522 = vmatprep.subr.mxu0 0.0
      %1523 = vmatpush1.msra.mxu0 0.0
      %1524 = vmatprep.subr.mxu0 0.0
      %1525 = vmatpush1.msra.mxu0 0.0
      %1526 = vmatprep.subr.mxu0 0.0
      %v1527 = vand.u32 %v1496, 4294901760
      %1528 = vmatpush1.msra.mxu0 %v1527
      %1529 = vmatprep.subr.mxu0 0.0
      %v1530 = vand.u32 %v1495, 4294901760
      %1531 = vmatpush1.msra.mxu0 %v1530
      %1532 = vmatprep.subr.mxu0 0.0
      %v1533 = vand.u32 %v1494, 4294901760
      %1534 = vmatpush1.msra.mxu0 %v1533
      %1535 = vmatprep.subr.mxu0 0.0
      %v1536 = vand.u32 %v1493, 4294901760
      %1537 = vmatpush1.msra.mxu0 %v1536
      %1538 = vmatprep.subr.mxu0 0.0
      %1539 = vmatpush2.msra.mxu0 0.0
      %1540 = vmatprep.subr.mxu0 0.0
      %1541 = vmatpush2.msra.mxu0 0.0
      %1542 = vmatprep.subr.mxu0 0.0
      %1543 = vmatpush2.msra.mxu0 0.0
      %1544 = vmatprep.subr.mxu0 0.0
      %1545 = vmatpush2.msra.mxu0 0.0
      %1546 = vmatprep.subr.mxu0 0.0
      %1547 = vmatpush2.msra.mxu0 0.0
      %1548 = vmatprep.subr.mxu0 0.0
      %1549 = vmatpush2.msra.mxu0 0.0
      %1550 = vmatprep.subr.mxu0 0.0
      %1551 = vmatpush2.msra.mxu0 0.0
      %1552 = vmatprep.subr.mxu0 0.0
      %1553 = vmatpush2.msra.mxu0 0.0
      %1554 = vmatprep.subr.mxu0 0.0
      %1555 = vmatpush2.msra.mxu0 0.0
      %1556 = vmatprep.subr.mxu0 0.0
      %1557 = vmatpush2.msra.mxu0 0.0
      %1558 = vmatprep.subr.mxu0 0.0
      %1559 = vmatpush2.msra.mxu0 0.0
      %1560 = vmatprep.subr.mxu0 0.0
      %1561 = vmatpush2.msra.mxu0 0.0
      %1562 = vmatprep.subr.mxu0 0.0
      %1563 = vmatpush2.msra.mxu0 0.0
      %1564 = vmatprep.subr.mxu0 0.0
      %1565 = vmatpush2.msra.mxu0 0.0
      %1566 = vmatprep.subr.mxu0 0.0
      %1567 = vmatpush2.msra.mxu0 0.0
      %1568 = vmatprep.subr.mxu0 0.0
      %1569 = vmatpush2.msra.mxu0 0.0
      %1570 = vmatprep.mubr.f32.mxu0 0.0
      %v1571 = vand.u32 %v1500, 4294901760
      %v1572 = vsub.f32 %v1500, %v1571
      %v1573 = vand.u32 %v1572, 4294901760
      %v1574 = vsub.f32 %v1572, %v1573
      %v1575 = vand.u32 %v1574, 4294901760
      %1576 = vmatmul.mubr.f32.gmra.mxu0 %v1575
      %v1577 = vpop.f32.mrf.mxu0
      %v1578 = vadd.f32 %v1497, %v1577
      %v1579 = vpop.f32.mrf.mxu0
      %1580 = vdwg.mxu0
      %1581 = vmatprep.subr.mxu0 0.0
      %1582 = vmatpush1.msra.mxu0 0.0
      %1583 = vmatprep.subr.mxu0 0.0
      %1584 = vmatpush1.msra.mxu0 0.0
      %1585 = vmatprep.subr.mxu0 0.0
      %1586 = vmatpush1.msra.mxu0 0.0
      %1587 = vmatprep.subr.mxu0 0.0
      %1588 = vmatpush1.msra.mxu0 0.0
      %1589 = vmatprep.subr.mxu0 0.0
      %1590 = vmatpush1.msra.mxu0 0.0
      %1591 = vmatprep.subr.mxu0 0.0
      %1592 = vmatpush1.msra.mxu0 0.0
      %1593 = vmatprep.subr.mxu0 0.0
      %1594 = vmatpush1.msra.mxu0 0.0
      %1595 = vmatprep.subr.mxu0 0.0
      %1596 = vmatpush1.msra.mxu0 0.0
      %1597 = vmatprep.subr.mxu0 0.0
      %1598 = vmatpush1.msra.mxu0 0.0
      %1599 = vmatprep.subr.mxu0 0.0
      %1600 = vmatpush1.msra.mxu0 0.0
      %1601 = vmatprep.subr.mxu0 0.0
      %1602 = vmatpush1.msra.mxu0 0.0
      %1603 = vmatprep.subr.mxu0 0.0
      %1604 = vmatpush1.msra.mxu0 0.0
      %1605 = vmatprep.subr.mxu0 0.0
      %v1606 = vand.u32 %v1496, 4294901760
      %v1607 = vsub.f32 %v1496, %v1606
      %v1608 = vand.u32 %v1607, 4294901760
      %v1609 = vsub.f32 %v1607, %v1608
      %v1610 = vand.u32 %v1609, 4294901760
      %1611 = vmatpush1.msra.mxu0 %v1610
      %1612 = vmatprep.subr.mxu0 0.0
      %v1613 = vand.u32 %v1495, 4294901760
      %v1614 = vsub.f32 %v1495, %v1613
      %v1615 = vand.u32 %v1614, 4294901760
      %v1616 = vsub.f32 %v1614, %v1615
      %v1617 = vand.u32 %v1616, 4294901760
      %1618 = vmatpush1.msra.mxu0 %v1617
      %1619 = vmatprep.subr.mxu0 0.0
      %v1620 = vand.u32 %v1494, 4294901760
      %v1621 = vsub.f32 %v1494, %v1620
      %v1622 = vand.u32 %v1621, 4294901760
      %v1623 = vsub.f32 %v1621, %v1622
      %v1624 = vand.u32 %v1623, 4294901760
      %1625 = vmatpush1.msra.mxu0 %v1624
      %1626 = vmatprep.subr.mxu0 0.0
      %v1627 = vand.u32 %v1493, 4294901760
      %v1628 = vsub.f32 %v1493, %v1627
      %v1629 = vand.u32 %v1628, 4294901760
      %v1630 = vsub.f32 %v1628, %v1629
      %v1631 = vand.u32 %v1630, 4294901760
      %1632 = vmatpush1.msra.mxu0 %v1631
      %1633 = vmatprep.subr.mxu0 0.0
      %1634 = vmatpush2.msra.mxu0 0.0
      %1635 = vmatprep.subr.mxu0 0.0
      %1636 = vmatpush2.msra.mxu0 0.0
      %1637 = vmatprep.subr.mxu0 0.0
      %1638 = vmatpush2.msra.mxu0 0.0
      %1639 = vmatprep.subr.mxu0 0.0
      %1640 = vmatpush2.msra.mxu0 0.0
      %1641 = vmatprep.subr.mxu0 0.0
      %1642 = vmatpush2.msra.mxu0 0.0
      %1643 = vmatprep.subr.mxu0 0.0
      %1644 = vmatpush2.msra.mxu0 0.0
      %1645 = vmatprep.subr.mxu0 0.0
      %1646 = vmatpush2.msra.mxu0 0.0
      %1647 = vmatprep.subr.mxu0 0.0
      %1648 = vmatpush2.msra.mxu0 0.0
      %1649 = vmatprep.subr.mxu0 0.0
      %1650 = vmatpush2.msra.mxu0 0.0
      %1651 = vmatprep.subr.mxu0 0.0
      %1652 = vmatpush2.msra.mxu0 0.0
      %1653 = vmatprep.subr.mxu0 0.0
      %1654 = vmatpush2.msra.mxu0 0.0
      %1655 = vmatprep.subr.mxu0 0.0
      %1656 = vmatpush2.msra.mxu0 0.0
      %1657 = vmatprep.subr.mxu0 0.0
      %1658 = vmatpush2.msra.mxu0 0.0
      %1659 = vmatprep.subr.mxu0 0.0
      %1660 = vmatpush2.msra.mxu0 0.0
      %1661 = vmatprep.subr.mxu0 0.0
      %1662 = vmatpush2.msra.mxu0 0.0
      %1663 = vmatprep.subr.mxu0 0.0
      %1664 = vmatpush2.msra.mxu0 0.0
      %1665 = vmatprep.mubr.f32.mxu0 0.0
      %v1666 = vand.u32 %v1500, 4294901760
      %1667 = vmatmul.mubr.f32.gmra.mxu0 %v1666
      %v1668 = vpop.f32.mrf.mxu0
      %v1669 = vadd.f32 %v1578, %v1668
      %v1670 = vpop.f32.mrf.mxu0
      %1671 = vdwg.mxu0
      %1672 = vmatprep.subr.mxu0 0.0
      %1673 = vmatpush1.msra.mxu0 0.0
      %1674 = vmatprep.subr.mxu0 0.0
      %1675 = vmatpush1.msra.mxu0 0.0
      %1676 = vmatprep.subr.mxu0 0.0
      %1677 = vmatpush1.msra.mxu0 0.0
      %1678 = vmatprep.subr.mxu0 0.0
      %1679 = vmatpush1.msra.mxu0 0.0
      %1680 = vmatprep.subr.mxu0 0.0
      %1681 = vmatpush1.msra.mxu0 0.0
      %1682 = vmatprep.subr.mxu0 0.0
      %1683 = vmatpush1.msra.mxu0 0.0
      %1684 = vmatprep.subr.mxu0 0.0
      %1685 = vmatpush1.msra.mxu0 0.0
      %1686 = vmatprep.subr.mxu0 0.0
      %1687 = vmatpush1.msra.mxu0 0.0
      %1688 = vmatprep.subr.mxu0 0.0
      %1689 = vmatpush1.msra.mxu0 0.0
      %1690 = vmatprep.subr.mxu0 0.0
      %1691 = vmatpush1.msra.mxu0 0.0
      %1692 = vmatprep.subr.mxu0 0.0
      %1693 = vmatpush1.msra.mxu0 0.0
      %1694 = vmatprep.subr.mxu0 0.0
      %1695 = vmatpush1.msra.mxu0 0.0
      %1696 = vmatprep.subr.mxu0 0.0
      %v1697 = vand.u32 %v1496, 4294901760
      %v1698 = vsub.f32 %v1496, %v1697
      %1699 = vmatpush1.msra.mxu0 %v1698
      %1700 = vmatprep.subr.mxu0 0.0
      %v1701 = vand.u32 %v1495, 4294901760
      %v1702 = vsub.f32 %v1495, %v1701
      %1703 = vmatpush1.msra.mxu0 %v1702
      %1704 = vmatprep.subr.mxu0 0.0
      %v1705 = vand.u32 %v1494, 4294901760
      %v1706 = vsub.f32 %v1494, %v1705
      %1707 = vmatpush1.msra.mxu0 %v1706
      %1708 = vmatprep.subr.mxu0 0.0
      %v1709 = vand.u32 %v1493, 4294901760
      %v1710 = vsub.f32 %v1493, %v1709
      %1711 = vmatpush1.msra.mxu0 %v1710
      %1712 = vmatprep.subr.mxu0 0.0
      %1713 = vmatpush2.msra.mxu0 0.0
      %1714 = vmatprep.subr.mxu0 0.0
      %1715 = vmatpush2.msra.mxu0 0.0
      %1716 = vmatprep.subr.mxu0 0.0
      %1717 = vmatpush2.msra.mxu0 0.0
      %1718 = vmatprep.subr.mxu0 0.0
      %1719 = vmatpush2.msra.mxu0 0.0
      %1720 = vmatprep.subr.mxu0 0.0
      %1721 = vmatpush2.msra.mxu0 0.0
      %1722 = vmatprep.subr.mxu0 0.0
      %1723 = vmatpush2.msra.mxu0 0.0
      %1724 = vmatprep.subr.mxu0 0.0
      %1725 = vmatpush2.msra.mxu0 0.0
      %1726 = vmatprep.subr.mxu0 0.0
      %1727 = vmatpush2.msra.mxu0 0.0
      %1728 = vmatprep.subr.mxu0 0.0
      %1729 = vmatpush2.msra.mxu0 0.0
      %1730 = vmatprep.subr.mxu0 0.0
      %1731 = vmatpush2.msra.mxu0 0.0
      %1732 = vmatprep.subr.mxu0 0.0
      %1733 = vmatpush2.msra.mxu0 0.0
      %1734 = vmatprep.subr.mxu0 0.0
      %1735 = vmatpush2.msra.mxu0 0.0
      %1736 = vmatprep.subr.mxu0 0.0
      %1737 = vmatpush2.msra.mxu0 0.0
      %1738 = vmatprep.subr.mxu0 0.0
      %1739 = vmatpush2.msra.mxu0 0.0
      %1740 = vmatprep.subr.mxu0 0.0
      %1741 = vmatpush2.msra.mxu0 0.0
      %1742 = vmatprep.subr.mxu0 0.0
      %1743 = vmatpush2.msra.mxu0 0.0
      %1744 = vmatprep.mubr.f32.mxu0 0.0
      %v1745 = vand.u32 %v1500, 4294901760
      %v1746 = vsub.f32 %v1500, %v1745
      %1747 = vmatmul.mubr.f32.gmra.mxu0 %v1746
      %v1748 = vpop.f32.mrf.mxu0
      %v1749 = vadd.f32 %v1669, %v1748
      %v1750 = vpop.f32.mrf.mxu0
      %1751 = vdwg.mxu0
      %1752 = vmatprep.subr.mxu0 0.0
      %1753 = vmatpush1.msra.mxu0 0.0
      %1754 = vmatprep.subr.mxu0 0.0
      %1755 = vmatpush1.msra.mxu0 0.0
      %1756 = vmatprep.subr.mxu0 0.0
      %1757 = vmatpush1.msra.mxu0 0.0
      %1758 = vmatprep.subr.mxu0 0.0
      %1759 = vmatpush1.msra.mxu0 0.0
      %1760 = vmatprep.subr.mxu0 0.0
      %1761 = vmatpush1.msra.mxu0 0.0
      %1762 = vmatprep.subr.mxu0 0.0
      %1763 = vmatpush1.msra.mxu0 0.0
      %1764 = vmatprep.subr.mxu0 0.0
      %1765 = vmatpush1.msra.mxu0 0.0
      %1766 = vmatprep.subr.mxu0 0.0
      %1767 = vmatpush1.msra.mxu0 0.0
      %1768 = vmatprep.subr.mxu0 0.0
      %1769 = vmatpush1.msra.mxu0 0.0
      %1770 = vmatprep.subr.mxu0 0.0
      %1771 = vmatpush1.msra.mxu0 0.0
      %1772 = vmatprep.subr.mxu0 0.0
      %1773 = vmatpush1.msra.mxu0 0.0
      %1774 = vmatprep.subr.mxu0 0.0
      %1775 = vmatpush1.msra.mxu0 0.0
      %1776 = vmatprep.subr.mxu0 0.0
      %v1777 = vand.u32 %v1496, 4294901760
      %1778 = vmatpush1.msra.mxu0 %v1777
      %1779 = vmatprep.subr.mxu0 0.0
      %v1780 = vand.u32 %v1495, 4294901760
      %1781 = vmatpush1.msra.mxu0 %v1780
      %1782 = vmatprep.subr.mxu0 0.0
      %v1783 = vand.u32 %v1494, 4294901760
      %1784 = vmatpush1.msra.mxu0 %v1783
      %1785 = vmatprep.subr.mxu0 0.0
      %v1786 = vand.u32 %v1493, 4294901760
      %1787 = vmatpush1.msra.mxu0 %v1786
      %1788 = vmatprep.subr.mxu0 0.0
      %1789 = vmatpush2.msra.mxu0 0.0
      %1790 = vmatprep.subr.mxu0 0.0
      %1791 = vmatpush2.msra.mxu0 0.0
      %1792 = vmatprep.subr.mxu0 0.0
      %1793 = vmatpush2.msra.mxu0 0.0
      %1794 = vmatprep.subr.mxu0 0.0
      %1795 = vmatpush2.msra.mxu0 0.0
      %1796 = vmatprep.subr.mxu0 0.0
      %1797 = vmatpush2.msra.mxu0 0.0
      %1798 = vmatprep.subr.mxu0 0.0
      %1799 = vmatpush2.msra.mxu0 0.0
      %1800 = vmatprep.subr.mxu0 0.0
      %1801 = vmatpush2.msra.mxu0 0.0
      %1802 = vmatprep.subr.mxu0 0.0
      %1803 = vmatpush2.msra.mxu0 0.0
      %1804 = vmatprep.subr.mxu0 0.0
      %1805 = vmatpush2.msra.mxu0 0.0
      %1806 = vmatprep.subr.mxu0 0.0
      %1807 = vmatpush2.msra.mxu0 0.0
      %1808 = vmatprep.subr.mxu0 0.0
      %1809 = vmatpush2.msra.mxu0 0.0
      %1810 = vmatprep.subr.mxu0 0.0
      %1811 = vmatpush2.msra.mxu0 0.0
      %1812 = vmatprep.subr.mxu0 0.0
      %1813 = vmatpush2.msra.mxu0 0.0
      %1814 = vmatprep.subr.mxu0 0.0
      %1815 = vmatpush2.msra.mxu0 0.0
      %1816 = vmatprep.subr.mxu0 0.0
      %1817 = vmatpush2.msra.mxu0 0.0
      %1818 = vmatprep.subr.mxu0 0.0
      %1819 = vmatpush2.msra.mxu0 0.0
      %1820 = vmatprep.mubr.f32.mxu0 0.0
      %v1821 = vand.u32 %v1500, 4294901760
      %v1822 = vsub.f32 %v1500, %v1821
      %v1823 = vand.u32 %v1822, 4294901760
      %1824 = vmatmul.mubr.f32.gmra.mxu0 %v1823
      %v1825 = vpop.f32.mrf.mxu0
      %v1826 = vadd.f32 %v1749, %v1825
      %v1827 = vpop.f32.mrf.mxu0
      %1828 = vdwg.mxu0
      %1829 = vmatprep.subr.mxu0 0.0
      %1830 = vmatpush1.msra.mxu0 0.0
      %1831 = vmatprep.subr.mxu0 0.0
      %1832 = vmatpush1.msra.mxu0 0.0
      %1833 = vmatprep.subr.mxu0 0.0
      %1834 = vmatpush1.msra.mxu0 0.0
      %1835 = vmatprep.subr.mxu0 0.0
      %1836 = vmatpush1.msra.mxu0 0.0
      %1837 = vmatprep.subr.mxu0 0.0
      %1838 = vmatpush1.msra.mxu0 0.0
      %1839 = vmatprep.subr.mxu0 0.0
      %1840 = vmatpush1.msra.mxu0 0.0
      %1841 = vmatprep.subr.mxu0 0.0
      %1842 = vmatpush1.msra.mxu0 0.0
      %1843 = vmatprep.subr.mxu0 0.0
      %1844 = vmatpush1.msra.mxu0 0.0
      %1845 = vmatprep.subr.mxu0 0.0
      %1846 = vmatpush1.msra.mxu0 0.0
      %1847 = vmatprep.subr.mxu0 0.0
      %1848 = vmatpush1.msra.mxu0 0.0
      %1849 = vmatprep.subr.mxu0 0.0
      %1850 = vmatpush1.msra.mxu0 0.0
      %1851 = vmatprep.subr.mxu0 0.0
      %1852 = vmatpush1.msra.mxu0 0.0
      %1853 = vmatprep.subr.mxu0 0.0
      %v1854 = vand.u32 %v1496, 4294901760
      %v1855 = vsub.f32 %v1496, %v1854
      %v1856 = vand.u32 %v1855, 4294901760
      %1857 = vmatpush1.msra.mxu0 %v1856
      %1858 = vmatprep.subr.mxu0 0.0
      %v1859 = vand.u32 %v1495, 4294901760
      %v1860 = vsub.f32 %v1495, %v1859
      %v1861 = vand.u32 %v1860, 4294901760
      %1862 = vmatpush1.msra.mxu0 %v1861
      %1863 = vmatprep.subr.mxu0 0.0
      %v1864 = vand.u32 %v1494, 4294901760
      %v1865 = vsub.f32 %v1494, %v1864
      %v1866 = vand.u32 %v1865, 4294901760
      %1867 = vmatpush1.msra.mxu0 %v1866
      %1868 = vmatprep.subr.mxu0 0.0
      %v1869 = vand.u32 %v1493, 4294901760
      %v1870 = vsub.f32 %v1493, %v1869
      %v1871 = vand.u32 %v1870, 4294901760
      %1872 = vmatpush1.msra.mxu0 %v1871
      %1873 = vmatprep.subr.mxu0 0.0
      %1874 = vmatpush2.msra.mxu0 0.0
      %1875 = vmatprep.subr.mxu0 0.0
      %1876 = vmatpush2.msra.mxu0 0.0
      %1877 = vmatprep.subr.mxu0 0.0
      %1878 = vmatpush2.msra.mxu0 0.0
      %1879 = vmatprep.subr.mxu0 0.0
      %1880 = vmatpush2.msra.mxu0 0.0
      %1881 = vmatprep.subr.mxu0 0.0
      %1882 = vmatpush2.msra.mxu0 0.0
      %1883 = vmatprep.subr.mxu0 0.0
      %1884 = vmatpush2.msra.mxu0 0.0
      %1885 = vmatprep.subr.mxu0 0.0
      %1886 = vmatpush2.msra.mxu0 0.0
      %1887 = vmatprep.subr.mxu0 0.0
      %1888 = vmatpush2.msra.mxu0 0.0
      %1889 = vmatprep.subr.mxu0 0.0
      %1890 = vmatpush2.msra.mxu0 0.0
      %1891 = vmatprep.subr.mxu0 0.0
      %1892 = vmatpush2.msra.mxu0 0.0
      %1893 = vmatprep.subr.mxu0 0.0
      %1894 = vmatpush2.msra.mxu0 0.0
      %1895 = vmatprep.subr.mxu0 0.0
      %1896 = vmatpush2.msra.mxu0 0.0
      %1897 = vmatprep.subr.mxu0 0.0
      %1898 = vmatpush2.msra.mxu0 0.0
      %1899 = vmatprep.subr.mxu0 0.0
      %1900 = vmatpush2.msra.mxu0 0.0
      %1901 = vmatprep.subr.mxu0 0.0
      %1902 = vmatpush2.msra.mxu0 0.0
      %1903 = vmatprep.subr.mxu0 0.0
      %1904 = vmatpush2.msra.mxu0 0.0
      %1905 = vmatprep.mubr.f32.mxu0 0.0
      %v1906 = vand.u32 %v1500, 4294901760
      %1907 = vmatmul.mubr.f32.gmra.mxu0 %v1906
      %v1908 = vpop.f32.mrf.mxu0
      %v1909 = vadd.f32 %v1826, %v1908
      %v1910 = vpop.f32.mrf.mxu0
      %1911 = vdwg.mxu0
      %1912 = vmatprep.subr.mxu0 0.0
      %1913 = vmatpush1.msra.mxu0 0.0
      %1914 = vmatprep.subr.mxu0 0.0
      %1915 = vmatpush1.msra.mxu0 0.0
      %1916 = vmatprep.subr.mxu0 0.0
      %1917 = vmatpush1.msra.mxu0 0.0
      %1918 = vmatprep.subr.mxu0 0.0
      %1919 = vmatpush1.msra.mxu0 0.0
      %1920 = vmatprep.subr.mxu0 0.0
      %1921 = vmatpush1.msra.mxu0 0.0
      %1922 = vmatprep.subr.mxu0 0.0
      %1923 = vmatpush1.msra.mxu0 0.0
      %1924 = vmatprep.subr.mxu0 0.0
      %1925 = vmatpush1.msra.mxu0 0.0
      %1926 = vmatprep.subr.mxu0 0.0
      %1927 = vmatpush1.msra.mxu0 0.0
      %1928 = vmatprep.subr.mxu0 0.0
      %1929 = vmatpush1.msra.mxu0 0.0
      %1930 = vmatprep.subr.mxu0 0.0
      %1931 = vmatpush1.msra.mxu0 0.0
      %1932 = vmatprep.subr.mxu0 0.0
      %1933 = vmatpush1.msra.mxu0 0.0
      %1934 = vmatprep.subr.mxu0 0.0
      %1935 = vmatpush1.msra.mxu0 0.0
      %1936 = vmatprep.subr.mxu0 0.0
      %v1937 = vand.u32 %v1496, 4294901760
      %1938 = vmatpush1.msra.mxu0 %v1937
      %1939 = vmatprep.subr.mxu0 0.0
      %v1940 = vand.u32 %v1495, 4294901760
      %1941 = vmatpush1.msra.mxu0 %v1940
      %1942 = vmatprep.subr.mxu0 0.0
      %v1943 = vand.u32 %v1494, 4294901760
      %1944 = vmatpush1.msra.mxu0 %v1943
      %1945 = vmatprep.subr.mxu0 0.0
      %v1946 = vand.u32 %v1493, 4294901760
      %1947 = vmatpush1.msra.mxu0 %v1946
      %1948 = vmatprep.subr.mxu0 0.0
      %1949 = vmatpush2.msra.mxu0 0.0
      %1950 = vmatprep.subr.mxu0 0.0
      %1951 = vmatpush2.msra.mxu0 0.0
      %1952 = vmatprep.subr.mxu0 0.0
      %1953 = vmatpush2.msra.mxu0 0.0
      %1954 = vmatprep.subr.mxu0 0.0
      %1955 = vmatpush2.msra.mxu0 0.0
      %1956 = vmatprep.subr.mxu0 0.0
      %1957 = vmatpush2.msra.mxu0 0.0
      %1958 = vmatprep.subr.mxu0 0.0
      %1959 = vmatpush2.msra.mxu0 0.0
      %1960 = vmatprep.subr.mxu0 0.0
      %1961 = vmatpush2.msra.mxu0 0.0
      %1962 = vmatprep.subr.mxu0 0.0
      %1963 = vmatpush2.msra.mxu0 0.0
      %1964 = vmatprep.subr.mxu0 0.0
      %1965 = vmatpush2.msra.mxu0 0.0
      %1966 = vmatprep.subr.mxu0 0.0
      %1967 = vmatpush2.msra.mxu0 0.0
      %1968 = vmatprep.subr.mxu0 0.0
      %1969 = vmatpush2.msra.mxu0 0.0
      %1970 = vmatprep.subr.mxu0 0.0
      %1971 = vmatpush2.msra.mxu0 0.0
      %1972 = vmatprep.subr.mxu0 0.0
      %1973 = vmatpush2.msra.mxu0 0.0
      %1974 = vmatprep.subr.mxu0 0.0
      %1975 = vmatpush2.msra.mxu0 0.0
      %1976 = vmatprep.subr.mxu0 0.0
      %1977 = vmatpush2.msra.mxu0 0.0
      %1978 = vmatprep.subr.mxu0 0.0
      %1979 = vmatpush2.msra.mxu0 0.0
      %1980 = vmatprep.mubr.f32.mxu0 0.0
      %v1981 = vand.u32 %v1500, 4294901760
      %1982 = vmatmul.mubr.f32.gmra.mxu0 %v1981
      %v1983 = vpop.f32.mrf.mxu0
      %v1984 = vadd.f32 %v1909, %v1983
      %v1985 = vpop.f32.mrf.mxu0
      %1986 = vdwg.mxu0
      %vm1987 = vcmask 0
      %1988 = vst.msk [vmem:[%s246] sm:$0x1] %vm1987, %v1984
      %p1989 = scmp.lt.s32.totalorder %s19, 1
      %s1990 = scalar_select %p1989, %s19, 1
      %s1991 = scalar_lea.vmem %s6, %s1990
      // Predicated region
      $region45: #{supervised_pretrain_forward.1} parent=43 // pred_check
        %p1992 = pneg %p168
      $region46: #{supervised_pretrain_forward.1} parent=43 // pred_check_branch
        %1994 = sbr.rel (%p1992) target = $region48
      $region47: #{supervised_pretrain_forward.1} parent=43 // pred_region
        _
      $region48: #{supervised_pretrain_forward.1} parent=43 // pred_fallthru
        _
    $region44: #{supervised_pretrain_forward.1} parent=5 // pred_fallthru
      _
    %p1995 = scmp.le.s32.totalorder 2, %s14
    // Predicated region
    $region49: #{supervised_pretrain_forward.1} parent=5 // pred_check
      %p1996 = pneg %p1995
    $region50: #{supervised_pretrain_forward.1} parent=5 // pred_check_branch
      %1998 = sbr.rel (%p1996) target = $region52
    $region51: #{supervised_pretrain_forward.1} parent=5 // pred_region
      %s1999 = ssub.s32 %s14, 2
      // Predicated region
      $region53: #{supervised_pretrain_forward.1} parent=51 // pred_check
        %p2000 = pneg %p174
      $region54: #{supervised_pretrain_forward.1} parent=51 // pred_check_branch
        %2002 = sbr.rel (%p2000) target = $region56
      $region55: #{supervised_pretrain_forward.1} parent=51 // pred_region
        %p2003 = scmp.lt.s32.totalorder %s20, 1
        %s2004 = scalar_select %p2003, %s20, 1
        %s2005 = scalar_lea.vmem %s6, %s2004
      $region56: #{supervised_pretrain_forward.1} parent=51 // pred_fallthru
        _
    $region52: #{supervised_pretrain_forward.1} parent=5 // pred_fallthru
      _
  $region6: #{supervised_pretrain_forward.1} parent=0 // loop_footer
    %s18 = sadd.s32 1, %s14
  $region7: #{supervised_pretrain_forward.1} parent=0 // loop_footer_branch
    %13 = sbr.rel target = $region3
  $region8: #{supervised_pretrain_forward.1} parent=0 // loop_exit
    _

</llo_original>
